<compile_context>
chip_gen: v7x
topology: tpu7x:2x2x1
jax: 0.10.0
libtpu: 0.0.40
codegen_flags: <defaults>
</compile_context>

<pallas_src>
import jax
import jax.numpy as jnp
import numpy as np
from jax.experimental import pallas as pl
from jax.experimental.pallas import tpu as pltpu

EPS = 1e-12  # F.normalize default eps (clamp_min on the norm)


def hgnn_sds_kernel(idx2_ref, idxd_ref, idxx_ref, symp_ref, dise_ref,
                    w_ref, b_ref, out_ref):
    f32 = jnp.float32
    tb, K = idx2_ref.shape                 # static
    Rs = symp_ref.shape[0]                 # padded symptom vocab (mult. of 8)
    Rd = dise_ref.shape[0]                 # padded disease vocab (mult. of 8)

    biases = b_ref[...]                    # (4, DP): [w2_b, w1_b, w0_b, wl_b]
    symp_tab = symp_ref[...]               # (Rs, DP)
    dise_tab = dise_ref[...]               # (Rd, DP)

    # ---- 2-hop symptom aggregation ------------------------------------------
    #   mean_k relu(W2 . symp[idx2[b,k]] + b2)
    #     == (counts(idx2[b,:]) @ relu(symp_tab @ W2 + b2)) / K
    # because row selection commutes with the row-wise affine map + relu.
    a2 = jnp.dot(symp_tab, w_ref[0], preferred_element_type=f32) + biases[0:1, :]
    a2 = jnp.maximum(a2, 0.0)                                     # (Rs, DP)

    idx2 = idx2_ref[...]                                          # (tb, K) int32
    col_r = jax.lax.broadcasted_iota(jnp.int32, (tb, Rs), 1)
    counts = jnp.zeros((tb, Rs), f32)
    for k in range(K):                        # static unroll, K is small (20)
        counts = counts + (idx2[:, k:k + 1] == col_r).astype(f32)

    z2 = jnp.dot(counts, a2, preferred_element_type=f32) * (1.0 / K)  # (tb, DP)
    # L1 normalize (exact divide; approx EUP reciprocal would loosen 1e-5).
    denom_l1 = jnp.maximum(jnp.sum(jnp.abs(z2), axis=1, keepdims=True), EPS)
    z2 = z2 / denom_l1

    # ---- 1-hop disease: relu(w1(cat[emb_dise, z2])), L2 normalize -----------
    onehot_d = (idxd_ref[...] ==
                jax.lax.broadcasted_iota(jnp.int32, (tb, Rd), 1)).astype(f32)
    embd = jnp.dot(onehot_d, dise_tab, preferred_element_type=f32)    # (tb, DP)
    zd = (jnp.dot(embd, w_ref[1], preferred_element_type=f32)
          + jnp.dot(z2, w_ref[2], preferred_element_type=f32)
          + biases[1:2, :])
    zd = jnp.maximum(zd, 0.0)
    zd_norm = jnp.sqrt(jnp.sum(zd * zd, axis=1, keepdims=True))
    zd = zd / jnp.maximum(zd_norm, EPS)
    # num_sds_1_hop == 1, so the mean over the hop axis is the identity.
    # TODO(synk): generalize if the model config ever sets num_sds_1_hop > 1.

    # ---- target symptom update: relu(w0(cat[tgt, zd])), L2 normalize --------
    onehot_x = (idxx_ref[...] ==
                jax.lax.broadcasted_iota(jnp.int32, (tb, Rs), 1)).astype(f32)
    tgt = jnp.dot(onehot_x, symp_tab, preferred_element_type=f32)     # (tb, DP)
    z1 = (jnp.dot(tgt, w_ref[3], preferred_element_type=f32)
          + jnp.dot(zd, w_ref[4], preferred_element_type=f32)
          + biases[2:3, :])
    z1 = jnp.maximum(z1, 0.0)
    z1_norm = jnp.sqrt(jnp.sum(z1 * z1, axis=1, keepdims=True))
    z1 = z1 / jnp.maximum(z1_norm, EPS)

    # ---- final linear --------------------------------------------------------
    out = jnp.dot(z1, w_ref[5], preferred_element_type=f32) + biases[3:4, :]
    out_ref[...] = out.astype(out_ref.dtype)


def _round_up(n, m):
    return ((n + m - 1) // m) * m


def pack_params(params):
    """One-time padding / packing of parameters into lane-dense device constants.

    Hoisted out of the per-call forward (perf review): the pads / stack / concat
    would otherwise run as extra XLA ops on every call.
    """
    D = params['symp_embeds'].shape[1]
    DP = max(128, _round_up(D, 128))        # lane-dense feature width

    def pad_cols(a):
        return jnp.pad(a, [(0, 0)] * (a.ndim - 1) + [(0, DP - a.shape[-1])])

    def pad_tab(t):                          # rows -> mult. of 8, cols -> DP
        return jnp.pad(t, ((0, _round_up(t.shape[0], 8) - t.shape[0]),
                           (0, DP - t.shape[1])))

    def pad_mat(w):
        return jnp.pad(w, ((0, DP - w.shape[0]), (0, DP - w.shape[1])))

    w1w, w0w = params['w1_w'], params['w0_w']
    return {
        'D': D,
        'DP': DP,
        # TODO(synk): for very large symptom vocabularies the whole table no
        # longer fits VMEM; switch to scalar-prefetched indices + manual DMA
        # row gather instead of the in-VMEM count-matrix gather.
        'symp_tab': pad_tab(params['symp_embeds']),      # (Rs, DP)
        'dise_tab': pad_tab(params['dise_embeds']),      # (Rd, DP)
        'w_stack': jnp.stack([
            pad_mat(params['w2_w']),                      # 0: w2
            pad_mat(w1w[:D]), pad_mat(w1w[D:]),           # 1,2: w1 split
            pad_mat(w0w[:D]), pad_mat(w0w[D:]),           # 3,4: w0 split
            pad_mat(params['wl_w']),                      # 5: w_last
        ], axis=0),                                       # (6, DP, DP)
        'b_stack': jnp.concatenate([
            pad_cols(params['w2_b']), pad_cols(params['w1_b']),
            pad_cols(params['w0_b']), pad_cols(params['wl_b']),
        ], axis=0),                                       # (4, DP)
    }


def hgnn_sds_forward(x, sds_2_0, sds_1, packed, *, tb=None):
    """Pallas implementation of HGNN_SDS.forward (num_sds_1_hop == 1)."""
    B = x.shape[0]
    K = sds_2_0.shape[1]
    D, DP = packed['D'], packed['DP']
    Rs = packed['symp_tab'].shape[0]
    Rd = packed['dise_tab'].shape[0]
    assert sds_1.shape[1] == 1, "kernel assumes num_sds_1_hop == 1"

    # One grid step for small batches; >=2 'parallel' steps once B is large
    # enough to amortize ~0.35us/step so both v7x TensorCores get work.
    if tb is None:
        tb = B if (B < 256 or B % 16 != 0) else B // 2
    assert B % tb == 0 and (B == tb or tb % 8 == 0)
    nb = B // tb
    # Per-step VMEM is tiny: tables + weight stack ~0.5 MB (double-buffered
    # ~1 MB) plus O(tb*(K+DP)) activations -> no vmem_limit_bytes override is
    # needed on v5e (16 MiB scoped) / v6e (32 MiB) / v7x (64 MiB physical).

    idx2 = sds_2_0.astype(jnp.int32)                  # (B, K)
    idxd = sds_1[:, 0:1].astype(jnp.int32)            # (B, 1)
    idxx = x.reshape(B, 1).astype(jnp.int32)          # (B, 1)

    grid_spec = pltpu.PrefetchScalarGridSpec(
        num_scalar_prefetch=0,
        grid=(nb,),
        in_specs=[
            pl.BlockSpec((tb, K), lambda b: (b, 0)),         # 2-hop symp indices
            pl.BlockSpec((tb, 1), lambda b: (b, 0)),         # 1-hop dise indices
            pl.BlockSpec((tb, 1), lambda b: (b, 0)),         # target symp indices
            pl.BlockSpec((Rs, DP), lambda b: (0, 0)),        # symptom table
            pl.BlockSpec((Rd, DP), lambda b: (0, 0)),        # disease table
            pl.BlockSpec((6, DP, DP), lambda b: (0, 0, 0)),  # packed weights
            pl.BlockSpec((4, DP), lambda b: (0, 0)),         # packed biases
        ],
        out_specs=pl.BlockSpec((tb, DP), lambda b: (b, 0)),
    )

    out = pl.pallas_call(
        hgnn_sds_kernel,
        out_shape=jax.ShapeDtypeStruct((B, DP), jnp.float32),
        grid_spec=grid_spec,
        compiler_params=pltpu.CompilerParams(dimension_semantics=("parallel",)),
    )(idx2, idxd, idxx, packed['symp_tab'], packed['dise_tab'],
      packed['w_stack'], packed['b_stack'])

    return out[:, :D]


def reference_forward(x, sds_2_0, sds_1, params):
    """Pure-JAX reference mirroring the PyTorch forward."""
    symp = params['symp_embeds']
    dise = params['dise_embeds']
    tgt = symp[x]
    e2 = symp[sds_2_0]
    z2 = jnp.maximum(e2 @ params['w2_w'] + params['w2_b'], 0.0).mean(axis=1)
    z2 = z2 / jnp.maximum(jnp.sum(jnp.abs(z2), axis=1, keepdims=True), EPS)
    ed = dise[sds_1[:, 0]]
    zcat = jnp.concatenate([ed, z2], axis=1)
    zd = jnp.maximum(zcat @ params['w1_w'] + params['w1_b'], 0.0)
    zd = zd / jnp.maximum(jnp.linalg.norm(zd, axis=1, keepdims=True), EPS)
    z1cat = jnp.concatenate([tgt, zd], axis=1)
    z1 = jnp.maximum(z1cat @ params['w0_w'] + params['w0_b'], 0.0)
    z1 = z1 / jnp.maximum(jnp.linalg.norm(z1, axis=1, keepdims=True), EPS)
    return z1 @ params['wl_w'] + params['wl_b']


def init_params(key, num_symp, num_dise, embed_dim):
    ks = jax.random.split(key, 10)
    scale = 0.1
    symp = scale * jax.random.normal(ks[0], (num_symp + 1, embed_dim), jnp.float32)
    dise = scale * jax.random.normal(ks[1], (num_dise + 1, embed_dim), jnp.float32)
    # padding_idx=0 -> zero row
    symp = symp.at[0].set(0.0)
    dise = dise.at[0].set(0.0)
    params = {
        'symp_embeds': symp,
        'dise_embeds': dise,
        # Linear weights stored as [in, out] (transposed from PyTorch's [out, in]).
        'w2_w': scale * jax.random.normal(ks[2], (embed_dim, embed_dim), jnp.float32),
        'w2_b': scale * jax.random.normal(ks[3], (1, embed_dim), jnp.float32),
        'w1_w': scale * jax.random.normal(ks[4], (2 * embed_dim, embed_dim), jnp.float32),
        'w1_b': scale * jax.random.normal(ks[5], (1, embed_dim), jnp.float32),
        'w0_w': scale * jax.random.normal(ks[6], (2 * embed_dim, embed_dim), jnp.float32),
        'w0_b': scale * jax.random.normal(ks[7], (1, embed_dim), jnp.float32),
        'wl_w': scale * jax.random.normal(ks[8], (embed_dim, embed_dim), jnp.float32),
        'wl_b': scale * jax.random.normal(ks[9], (1, embed_dim), jnp.float32),
    }
    return params


if __name__ == "__main__":
    num_symp = 50          # num_symp
    num_dise = 12          # num_dise
    embed_dim = 32         # symp_embedding_dim
    B = 16                 # batch size
    K = 20                 # num_sds_2_hop
    num_sds_1_hop = 1

    key = jax.random.PRNGKey(0)
    kp, kx, k2, k1 = jax.random.split(key, 4)

    params = init_params(kp, num_symp, num_dise, embed_dim)
    packed = pack_params(params)   # one-time padded / packed device constants

    # x: symptom indices [B]; data['sds_2_0']: [B, 20]; data['sds_1']: [B, 1]
    x = jax.random.randint(kx, (B,), 1, num_symp + 1, dtype=jnp.int32)
    sds_2_0 = jax.random.randint(k2, (B, K), 0, num_symp + 1, dtype=jnp.int32)
    sds_1 = jax.random.randint(k1, (B, num_sds_1_hop), 1, num_dise + 1, dtype=jnp.int32)

    out = hgnn_sds_forward(x, sds_2_0, sds_1, packed)
    out = jax.block_until_ready(out)

    ref = jax.block_until_ready(reference_forward(x, sds_2_0, sds_1, params))
    np.testing.assert_allclose(np.asarray(out), np.asarray(ref), rtol=1e-5, atol=1e-5)

    print("KERNEL_OK")
</pallas_src>

<mosaic_0001>
module attributes {stable_mosaic.version = 11 : i64} {
  func.func @hgnn_sds_kernel(%arg0: i32, %arg1: memref<16x20xi32, #tpu.memory_space<vmem>>, %arg2: memref<16x1xi32, #tpu.memory_space<vmem>>, %arg3: memref<16x1xi32, #tpu.memory_space<vmem>>, %arg4: memref<56x128xf32, #tpu.memory_space<vmem>>, %arg5: memref<16x128xf32, #tpu.memory_space<vmem>>, %arg6: memref<6x128x128xf32, #tpu.memory_space<vmem>>, %arg7: memref<4x128xf32, #tpu.memory_space<vmem>>, %arg8: memref<16x128xf32, #tpu.memory_space<vmem>>) attributes {dimension_semantics = [#tpu.dimension_semantics<parallel>], iteration_bounds = array<i64: 1>, scalar_prefetch = 0 : i64, scratch_operands = 0 : i64, tpu.core_type = #tpu.core_type<tc>, window_params = [{transform_indices = @transform_0, window_bounds = array<i64: 16, 20>}, {transform_indices = @transform_1, window_bounds = array<i64: 16, 1>}, {transform_indices = @transform_2, window_bounds = array<i64: 16, 1>}, {pipeline_mode = #tpu.pipeline_mode<synchronous>, transform_indices = @transform_3, window_bounds = array<i64: 56, 128>}, {pipeline_mode = #tpu.pipeline_mode<synchronous>, transform_indices = @transform_4, window_bounds = array<i64: 16, 128>}, {pipeline_mode = #tpu.pipeline_mode<synchronous>, transform_indices = @transform_5, window_bounds = array<i64: 6, 128, 128>}, {pipeline_mode = #tpu.pipeline_mode<synchronous>, transform_indices = @transform_6, window_bounds = array<i64: 4, 128>}, {transform_indices = @transform_7, window_bounds = array<i64: 16, 128>}]} {
    %c0 = arith.constant 0 : index
    %c0_0 = arith.constant 0 : index
    %0 = vector.load %arg7[%c0, %c0_0] : memref<4x128xf32, #tpu.memory_space<vmem>>, vector<4x128xf32>
    %c0_1 = arith.constant 0 : index
    %c0_2 = arith.constant 0 : index
    %1 = vector.load %arg4[%c0_1, %c0_2] : memref<56x128xf32, #tpu.memory_space<vmem>>, vector<56x128xf32>
    %c0_3 = arith.constant 0 : index
    %c0_4 = arith.constant 0 : index
    %2 = vector.load %arg5[%c0_3, %c0_4] : memref<16x128xf32, #tpu.memory_space<vmem>>, vector<16x128xf32>
    %c0_5 = arith.constant 0 : index
    %c0_6 = arith.constant 0 : index
    %c0_7 = arith.constant 0 : index
    %3 = vector.load %arg6[%c0_5, %c0_6, %c0_7] : memref<6x128x128xf32, #tpu.memory_space<vmem>>, vector<1x128x128xf32>
    %4 = vector.shape_cast %3 : vector<1x128x128xf32> to vector<128x128xf32>
    %cst = arith.constant dense<0.000000e+00> : vector<56x128xf32>
    %5 = tpu.matmul %1, %4, %cst {dimension_numbers = #tpu.dot_dimension_numbers<[1], [0], [0], [1], [0, 0, 1, 1], [], []>} : vector<56x128xf32>, vector<128x128xf32>, vector<56x128xf32> -> vector<56x128xf32>
    %6 = vector.extract_strided_slice %0 {offsets = [0, 0], sizes = [1, 128], strides = [1, 1]} : vector<4x128xf32> to vector<1x128xf32>
    %7 = vector.broadcast %6 : vector<1x128xf32> to vector<56x128xf32>
    %8 = arith.addf %5, %7 : vector<56x128xf32>
    %cst_8 = arith.constant 0.000000e+00 : f32
    %9 = vector.broadcast %cst_8 : f32 to vector<56x128xf32>
    %10 = arith.maximumf %8, %9 : vector<56x128xf32>
    %c0_9 = arith.constant 0 : index
    %c0_10 = arith.constant 0 : index
    %11 = vector.load %arg1[%c0_9, %c0_10] : memref<16x20xi32, #tpu.memory_space<vmem>>, vector<16x20xi32>
    %12 = tpu.iota {dimensions = array<i32: 1>} : vector<16x56xi32>
    %cst_11 = arith.constant 0.000000e+00 : f32
    %13 = vector.broadcast %cst_11 : f32 to vector<16x56xf32>
    %14 = vector.extract_strided_slice %11 {offsets = [0, 0], sizes = [16, 1], strides = [1, 1]} : vector<16x20xi32> to vector<16x1xi32>
    %15 = vector.broadcast %14 : vector<16x1xi32> to vector<16x56xi32>
    %16 = arith.cmpi eq, %15, %12 : vector<16x56xi32>
    %17 = arith.extui %16 : vector<16x56xi1> to vector<16x56xi32>
    %18 = arith.sitofp %17 : vector<16x56xi32> to vector<16x56xf32>
    %19 = arith.addf %13, %18 : vector<16x56xf32>
    %20 = vector.extract_strided_slice %11 {offsets = [0, 1], sizes = [16, 1], strides = [1, 1]} : vector<16x20xi32> to vector<16x1xi32>
    %21 = vector.broadcast %20 : vector<16x1xi32> to vector<16x56xi32>
    %22 = arith.cmpi eq, %21, %12 : vector<16x56xi32>
    %23 = arith.extui %22 : vector<16x56xi1> to vector<16x56xi32>
    %24 = arith.sitofp %23 : vector<16x56xi32> to vector<16x56xf32>
    %25 = arith.addf %19, %24 : vector<16x56xf32>
    %26 = vector.extract_strided_slice %11 {offsets = [0, 2], sizes = [16, 1], strides = [1, 1]} : vector<16x20xi32> to vector<16x1xi32>
    %27 = vector.broadcast %26 : vector<16x1xi32> to vector<16x56xi32>
    %28 = arith.cmpi eq, %27, %12 : vector<16x56xi32>
    %29 = arith.extui %28 : vector<16x56xi1> to vector<16x56xi32>
    %30 = arith.sitofp %29 : vector<16x56xi32> to vector<16x56xf32>
    %31 = arith.addf %25, %30 : vector<16x56xf32>
    %32 = vector.extract_strided_slice %11 {offsets = [0, 3], sizes = [16, 1], strides = [1, 1]} : vector<16x20xi32> to vector<16x1xi32>
    %33 = vector.broadcast %32 : vector<16x1xi32> to vector<16x56xi32>
    %34 = arith.cmpi eq, %33, %12 : vector<16x56xi32>
    %35 = arith.extui %34 : vector<16x56xi1> to vector<16x56xi32>
    %36 = arith.sitofp %35 : vector<16x56xi32> to vector<16x56xf32>
    %37 = arith.addf %31, %36 : vector<16x56xf32>
    %38 = vector.extract_strided_slice %11 {offsets = [0, 4], sizes = [16, 1], strides = [1, 1]} : vector<16x20xi32> to vector<16x1xi32>
    %39 = vector.broadcast %38 : vector<16x1xi32> to vector<16x56xi32>
    %40 = arith.cmpi eq, %39, %12 : vector<16x56xi32>
    %41 = arith.extui %40 : vector<16x56xi1> to vector<16x56xi32>
    %42 = arith.sitofp %41 : vector<16x56xi32> to vector<16x56xf32>
    %43 = arith.addf %37, %42 : vector<16x56xf32>
    %44 = vector.extract_strided_slice %11 {offsets = [0, 5], sizes = [16, 1], strides = [1, 1]} : vector<16x20xi32> to vector<16x1xi32>
    %45 = vector.broadcast %44 : vector<16x1xi32> to vector<16x56xi32>
    %46 = arith.cmpi eq, %45, %12 : vector<16x56xi32>
    %47 = arith.extui %46 : vector<16x56xi1> to vector<16x56xi32>
    %48 = arith.sitofp %47 : vector<16x56xi32> to vector<16x56xf32>
    %49 = arith.addf %43, %48 : vector<16x56xf32>
    %50 = vector.extract_strided_slice %11 {offsets = [0, 6], sizes = [16, 1], strides = [1, 1]} : vector<16x20xi32> to vector<16x1xi32>
    %51 = vector.broadcast %50 : vector<16x1xi32> to vector<16x56xi32>
    %52 = arith.cmpi eq, %51, %12 : vector<16x56xi32>
    %53 = arith.extui %52 : vector<16x56xi1> to vector<16x56xi32>
    %54 = arith.sitofp %53 : vector<16x56xi32> to vector<16x56xf32>
    %55 = arith.addf %49, %54 : vector<16x56xf32>
    %56 = vector.extract_strided_slice %11 {offsets = [0, 7], sizes = [16, 1], strides = [1, 1]} : vector<16x20xi32> to vector<16x1xi32>
    %57 = vector.broadcast %56 : vector<16x1xi32> to vector<16x56xi32>
    %58 = arith.cmpi eq, %57, %12 : vector<16x56xi32>
    %59 = arith.extui %58 : vector<16x56xi1> to vector<16x56xi32>
    %60 = arith.sitofp %59 : vector<16x56xi32> to vector<16x56xf32>
    %61 = arith.addf %55, %60 : vector<16x56xf32>
    %62 = vector.extract_strided_slice %11 {offsets = [0, 8], sizes = [16, 1], strides = [1, 1]} : vector<16x20xi32> to vector<16x1xi32>
    %63 = vector.broadcast %62 : vector<16x1xi32> to vector<16x56xi32>
    %64 = arith.cmpi eq, %63, %12 : vector<16x56xi32>
    %65 = arith.extui %64 : vector<16x56xi1> to vector<16x56xi32>
    %66 = arith.sitofp %65 : vector<16x56xi32> to vector<16x56xf32>
    %67 = arith.addf %61, %66 : vector<16x56xf32>
    %68 = vector.extract_strided_slice %11 {offsets = [0, 9], sizes = [16, 1], strides = [1, 1]} : vector<16x20xi32> to vector<16x1xi32>
    %69 = vector.broadcast %68 : vector<16x1xi32> to vector<16x56xi32>
    %70 = arith.cmpi eq, %69, %12 : vector<16x56xi32>
    %71 = arith.extui %70 : vector<16x56xi1> to vector<16x56xi32>
    %72 = arith.sitofp %71 : vector<16x56xi32> to vector<16x56xf32>
    %73 = arith.addf %67, %72 : vector<16x56xf32>
    %74 = vector.extract_strided_slice %11 {offsets = [0, 10], sizes = [16, 1], strides = [1, 1]} : vector<16x20xi32> to vector<16x1xi32>
    %75 = vector.broadcast %74 : vector<16x1xi32> to vector<16x56xi32>
    %76 = arith.cmpi eq, %75, %12 : vector<16x56xi32>
    %77 = arith.extui %76 : vector<16x56xi1> to vector<16x56xi32>
    %78 = arith.sitofp %77 : vector<16x56xi32> to vector<16x56xf32>
    %79 = arith.addf %73, %78 : vector<16x56xf32>
    %80 = vector.extract_strided_slice %11 {offsets = [0, 11], sizes = [16, 1], strides = [1, 1]} : vector<16x20xi32> to vector<16x1xi32>
    %81 = vector.broadcast %80 : vector<16x1xi32> to vector<16x56xi32>
    %82 = arith.cmpi eq, %81, %12 : vector<16x56xi32>
    %83 = arith.extui %82 : vector<16x56xi1> to vector<16x56xi32>
    %84 = arith.sitofp %83 : vector<16x56xi32> to vector<16x56xf32>
    %85 = arith.addf %79, %84 : vector<16x56xf32>
    %86 = vector.extract_strided_slice %11 {offsets = [0, 12], sizes = [16, 1], strides = [1, 1]} : vector<16x20xi32> to vector<16x1xi32>
    %87 = vector.broadcast %86 : vector<16x1xi32> to vector<16x56xi32>
    %88 = arith.cmpi eq, %87, %12 : vector<16x56xi32>
    %89 = arith.extui %88 : vector<16x56xi1> to vector<16x56xi32>
    %90 = arith.sitofp %89 : vector<16x56xi32> to vector<16x56xf32>
    %91 = arith.addf %85, %90 : vector<16x56xf32>
    %92 = vector.extract_strided_slice %11 {offsets = [0, 13], sizes = [16, 1], strides = [1, 1]} : vector<16x20xi32> to vector<16x1xi32>
    %93 = vector.broadcast %92 : vector<16x1xi32> to vector<16x56xi32>
    %94 = arith.cmpi eq, %93, %12 : vector<16x56xi32>
    %95 = arith.extui %94 : vector<16x56xi1> to vector<16x56xi32>
    %96 = arith.sitofp %95 : vector<16x56xi32> to vector<16x56xf32>
    %97 = arith.addf %91, %96 : vector<16x56xf32>
    %98 = vector.extract_strided_slice %11 {offsets = [0, 14], sizes = [16, 1], strides = [1, 1]} : vector<16x20xi32> to vector<16x1xi32>
    %99 = vector.broadcast %98 : vector<16x1xi32> to vector<16x56xi32>
    %100 = arith.cmpi eq, %99, %12 : vector<16x56xi32>
    %101 = arith.extui %100 : vector<16x56xi1> to vector<16x56xi32>
    %102 = arith.sitofp %101 : vector<16x56xi32> to vector<16x56xf32>
    %103 = arith.addf %97, %102 : vector<16x56xf32>
    %104 = vector.extract_strided_slice %11 {offsets = [0, 15], sizes = [16, 1], strides = [1, 1]} : vector<16x20xi32> to vector<16x1xi32>
    %105 = vector.broadcast %104 : vector<16x1xi32> to vector<16x56xi32>
    %106 = arith.cmpi eq, %105, %12 : vector<16x56xi32>
    %107 = arith.extui %106 : vector<16x56xi1> to vector<16x56xi32>
    %108 = arith.sitofp %107 : vector<16x56xi32> to vector<16x56xf32>
    %109 = arith.addf %103, %108 : vector<16x56xf32>
    %110 = vector.extract_strided_slice %11 {offsets = [0, 16], sizes = [16, 1], strides = [1, 1]} : vector<16x20xi32> to vector<16x1xi32>
    %111 = vector.broadcast %110 : vector<16x1xi32> to vector<16x56xi32>
    %112 = arith.cmpi eq, %111, %12 : vector<16x56xi32>
    %113 = arith.extui %112 : vector<16x56xi1> to vector<16x56xi32>
    %114 = arith.sitofp %113 : vector<16x56xi32> to vector<16x56xf32>
    %115 = arith.addf %109, %114 : vector<16x56xf32>
    %116 = vector.extract_strided_slice %11 {offsets = [0, 17], sizes = [16, 1], strides = [1, 1]} : vector<16x20xi32> to vector<16x1xi32>
    %117 = vector.broadcast %116 : vector<16x1xi32> to vector<16x56xi32>
    %118 = arith.cmpi eq, %117, %12 : vector<16x56xi32>
    %119 = arith.extui %118 : vector<16x56xi1> to vector<16x56xi32>
    %120 = arith.sitofp %119 : vector<16x56xi32> to vector<16x56xf32>
    %121 = arith.addf %115, %120 : vector<16x56xf32>
    %122 = vector.extract_strided_slice %11 {offsets = [0, 18], sizes = [16, 1], strides = [1, 1]} : vector<16x20xi32> to vector<16x1xi32>
    %123 = vector.broadcast %122 : vector<16x1xi32> to vector<16x56xi32>
    %124 = arith.cmpi eq, %123, %12 : vector<16x56xi32>
    %125 = arith.extui %124 : vector<16x56xi1> to vector<16x56xi32>
    %126 = arith.sitofp %125 : vector<16x56xi32> to vector<16x56xf32>
    %127 = arith.addf %121, %126 : vector<16x56xf32>
    %128 = vector.extract_strided_slice %11 {offsets = [0, 19], sizes = [16, 1], strides = [1, 1]} : vector<16x20xi32> to vector<16x1xi32>
    %129 = vector.broadcast %128 : vector<16x1xi32> to vector<16x56xi32>
    %130 = arith.cmpi eq, %129, %12 : vector<16x56xi32>
    %131 = arith.extui %130 : vector<16x56xi1> to vector<16x56xi32>
    %132 = arith.sitofp %131 : vector<16x56xi32> to vector<16x56xf32>
    %133 = arith.addf %127, %132 : vector<16x56xf32>
    %cst_12 = arith.constant dense<0.000000e+00> : vector<16x128xf32>
    %134 = tpu.matmul %133, %10, %cst_12 {dimension_numbers = #tpu.dot_dimension_numbers<[1], [0], [0], [1], [0, 0, 1, 1], [], []>} : vector<16x56xf32>, vector<56x128xf32>, vector<16x128xf32> -> vector<16x128xf32>
    %cst_13 = arith.constant 5.000000e-02 : f32
    %135 = vector.broadcast %cst_13 : f32 to vector<16x128xf32>
    %136 = arith.mulf %134, %135 : vector<16x128xf32>
    %137 = math.absf %136 : vector<16x128xf32>
    %cst_14 = arith.constant dense<0.000000e+00> : vector<16xf32>
    %138 = vector.multi_reduction <add>, %137, %cst_14 [1] : vector<16x128xf32> to vector<16xf32>
    %139 = vector.shape_cast %138 : vector<16xf32> to vector<16x1xf32>
    %cst_15 = arith.constant 9.99999996E-13 : f32
    %140 = vector.broadcast %cst_15 : f32 to vector<16x1xf32>
    %141 = arith.maximumf %139, %140 : vector<16x1xf32>
    %142 = vector.broadcast %141 : vector<16x1xf32> to vector<16x128xf32>
    %143 = arith.divf %136, %142 : vector<16x128xf32>
    %c0_16 = arith.constant 0 : index
    %c0_17 = arith.constant 0 : index
    %144 = vector.load %arg2[%c0_16, %c0_17] : memref<16x1xi32, #tpu.memory_space<vmem>>, vector<16x1xi32>
    %145 = tpu.iota {dimensions = array<i32: 1>} : vector<16x16xi32>
    %146 = vector.broadcast %144 : vector<16x1xi32> to vector<16x16xi32>
    %147 = arith.cmpi eq, %146, %145 : vector<16x16xi32>
    %148 = arith.extui %147 : vector<16x16xi1> to vector<16x16xi32>
    %149 = arith.sitofp %148 : vector<16x16xi32> to vector<16x16xf32>
    %cst_18 = arith.constant dense<0.000000e+00> : vector<16x128xf32>
    %150 = tpu.matmul %149, %2, %cst_18 {dimension_numbers = #tpu.dot_dimension_numbers<[1], [0], [0], [1], [0, 0, 1, 1], [], []>} : vector<16x16xf32>, vector<16x128xf32>, vector<16x128xf32> -> vector<16x128xf32>
    %c1 = arith.constant 1 : index
    %c0_19 = arith.constant 0 : index
    %c0_20 = arith.constant 0 : index
    %151 = vector.load %arg6[%c1, %c0_19, %c0_20] : memref<6x128x128xf32, #tpu.memory_space<vmem>>, vector<1x128x128xf32>
    %152 = vector.shape_cast %151 : vector<1x128x128xf32> to vector<128x128xf32>
    %cst_21 = arith.constant dense<0.000000e+00> : vector<16x128xf32>
    %153 = tpu.matmul %150, %152, %cst_21 {dimension_numbers = #tpu.dot_dimension_numbers<[1], [0], [0], [1], [0, 0, 1, 1], [], []>} : vector<16x128xf32>, vector<128x128xf32>, vector<16x128xf32> -> vector<16x128xf32>
    %c2 = arith.constant 2 : index
    %c0_22 = arith.constant 0 : index
    %c0_23 = arith.constant 0 : index
    %154 = vector.load %arg6[%c2, %c0_22, %c0_23] : memref<6x128x128xf32, #tpu.memory_space<vmem>>, vector<1x128x128xf32>
    %155 = vector.shape_cast %154 : vector<1x128x128xf32> to vector<128x128xf32>
    %cst_24 = arith.constant dense<0.000000e+00> : vector<16x128xf32>
    %156 = tpu.matmul %143, %155, %cst_24 {dimension_numbers = #tpu.dot_dimension_numbers<[1], [0], [0], [1], [0, 0, 1, 1], [], []>} : vector<16x128xf32>, vector<128x128xf32>, vector<16x128xf32> -> vector<16x128xf32>
    %157 = arith.addf %153, %156 : vector<16x128xf32>
    %158 = vector.extract_strided_slice %0 {offsets = [1, 0], sizes = [1, 128], strides = [1, 1]} : vector<4x128xf32> to vector<1x128xf32>
    %159 = vector.broadcast %158 : vector<1x128xf32> to vector<16x128xf32>
    %160 = arith.addf %157, %159 : vector<16x128xf32>
    %cst_25 = arith.constant 0.000000e+00 : f32
    %161 = vector.broadcast %cst_25 : f32 to vector<16x128xf32>
    %162 = arith.maximumf %160, %161 : vector<16x128xf32>
    %163 = arith.mulf %162, %162 : vector<16x128xf32>
    %cst_26 = arith.constant dense<0.000000e+00> : vector<16xf32>
    %164 = vector.multi_reduction <add>, %163, %cst_26 [1] : vector<16x128xf32> to vector<16xf32>
    %165 = vector.shape_cast %164 : vector<16xf32> to vector<16x1xf32>
    %166 = math.sqrt %165 : vector<16x1xf32>
    %cst_27 = arith.constant 9.99999996E-13 : f32
    %167 = vector.broadcast %cst_27 : f32 to vector<16x1xf32>
    %168 = arith.maximumf %166, %167 : vector<16x1xf32>
    %169 = vector.broadcast %168 : vector<16x1xf32> to vector<16x128xf32>
    %170 = arith.divf %162, %169 : vector<16x128xf32>
    %c0_28 = arith.constant 0 : index
    %c0_29 = arith.constant 0 : index
    %171 = vector.load %arg3[%c0_28, %c0_29] : memref<16x1xi32, #tpu.memory_space<vmem>>, vector<16x1xi32>
    %172 = tpu.iota {dimensions = array<i32: 1>} : vector<16x56xi32>
    %173 = vector.broadcast %171 : vector<16x1xi32> to vector<16x56xi32>
    %174 = arith.cmpi eq, %173, %172 : vector<16x56xi32>
    %175 = arith.extui %174 : vector<16x56xi1> to vector<16x56xi32>
    %176 = arith.sitofp %175 : vector<16x56xi32> to vector<16x56xf32>
    %cst_30 = arith.constant dense<0.000000e+00> : vector<16x128xf32>
    %177 = tpu.matmul %176, %1, %cst_30 {dimension_numbers = #tpu.dot_dimension_numbers<[1], [0], [0], [1], [0, 0, 1, 1], [], []>} : vector<16x56xf32>, vector<56x128xf32>, vector<16x128xf32> -> vector<16x128xf32>
    %c3 = arith.constant 3 : index
    %c0_31 = arith.constant 0 : index
    %c0_32 = arith.constant 0 : index
    %178 = vector.load %arg6[%c3, %c0_31, %c0_32] : memref<6x128x128xf32, #tpu.memory_space<vmem>>, vector<1x128x128xf32>
    %179 = vector.shape_cast %178 : vector<1x128x128xf32> to vector<128x128xf32>
    %cst_33 = arith.constant dense<0.000000e+00> : vector<16x128xf32>
    %180 = tpu.matmul %177, %179, %cst_33 {dimension_numbers = #tpu.dot_dimension_numbers<[1], [0], [0], [1], [0, 0, 1, 1], [], []>} : vector<16x128xf32>, vector<128x128xf32>, vector<16x128xf32> -> vector<16x128xf32>
    %c4 = arith.constant 4 : index
    %c0_34 = arith.constant 0 : index
    %c0_35 = arith.constant 0 : index
    %181 = vector.load %arg6[%c4, %c0_34, %c0_35] : memref<6x128x128xf32, #tpu.memory_space<vmem>>, vector<1x128x128xf32>
    %182 = vector.shape_cast %181 : vector<1x128x128xf32> to vector<128x128xf32>
    %cst_36 = arith.constant dense<0.000000e+00> : vector<16x128xf32>
    %183 = tpu.matmul %170, %182, %cst_36 {dimension_numbers = #tpu.dot_dimension_numbers<[1], [0], [0], [1], [0, 0, 1, 1], [], []>} : vector<16x128xf32>, vector<128x128xf32>, vector<16x128xf32> -> vector<16x128xf32>
    %184 = arith.addf %180, %183 : vector<16x128xf32>
    %185 = vector.extract_strided_slice %0 {offsets = [2, 0], sizes = [1, 128], strides = [1, 1]} : vector<4x128xf32> to vector<1x128xf32>
    %186 = vector.broadcast %185 : vector<1x128xf32> to vector<16x128xf32>
    %187 = arith.addf %184, %186 : vector<16x128xf32>
    %cst_37 = arith.constant 0.000000e+00 : f32
    %188 = vector.broadcast %cst_37 : f32 to vector<16x128xf32>
    %189 = arith.maximumf %187, %188 : vector<16x128xf32>
    %190 = arith.mulf %189, %189 : vector<16x128xf32>
    %cst_38 = arith.constant dense<0.000000e+00> : vector<16xf32>
    %191 = vector.multi_reduction <add>, %190, %cst_38 [1] : vector<16x128xf32> to vector<16xf32>
    %192 = vector.shape_cast %191 : vector<16xf32> to vector<16x1xf32>
    %193 = math.sqrt %192 : vector<16x1xf32>
    %cst_39 = arith.constant 9.99999996E-13 : f32
    %194 = vector.broadcast %cst_39 : f32 to vector<16x1xf32>
    %195 = arith.maximumf %193, %194 : vector<16x1xf32>
    %196 = vector.broadcast %195 : vector<16x1xf32> to vector<16x128xf32>
    %197 = arith.divf %189, %196 : vector<16x128xf32>
    %c5 = arith.constant 5 : index
    %c0_40 = arith.constant 0 : index
    %c0_41 = arith.constant 0 : index
    %198 = vector.load %arg6[%c5, %c0_40, %c0_41] : memref<6x128x128xf32, #tpu.memory_space<vmem>>, vector<1x128x128xf32>
    %199 = vector.shape_cast %198 : vector<1x128x128xf32> to vector<128x128xf32>
    %cst_42 = arith.constant dense<0.000000e+00> : vector<16x128xf32>
    %200 = tpu.matmul %197, %199, %cst_42 {dimension_numbers = #tpu.dot_dimension_numbers<[1], [0], [0], [1], [0, 0, 1, 1], [], []>} : vector<16x128xf32>, vector<128x128xf32>, vector<16x128xf32> -> vector<16x128xf32>
    %201 = vector.extract_strided_slice %0 {offsets = [3, 0], sizes = [1, 128], strides = [1, 1]} : vector<4x128xf32> to vector<1x128xf32>
    %202 = vector.broadcast %201 : vector<1x128xf32> to vector<16x128xf32>
    %203 = arith.addf %200, %202 : vector<16x128xf32>
    %c0_43 = arith.constant 0 : index
    %c0_44 = arith.constant 0 : index
    %204 = vector.load %arg8[%c0_43, %c0_44] : memref<16x128xf32, #tpu.memory_space<vmem>>, vector<16x128xf32>
    tpu.vector_store %arg8[%c0_43, %c0_44], %203 {strides = array<i32>} : memref<16x128xf32, #tpu.memory_space<vmem>>, vector<16x128xf32>,
    return
  }
  func.func @transform_0(%arg0: i32) -> (i32, i32) {
    %c0_i32 = arith.constant 0 : i32
    %c0_i32_0 = arith.constant 0 : i32
    return %arg0, %c0_i32 : i32, i32
  }
  func.func @transform_1(%arg0: i32) -> (i32, i32) {
    %c0_i32 = arith.constant 0 : i32
    %c0_i32_0 = arith.constant 0 : i32
    return %arg0, %c0_i32 : i32, i32
  }
  func.func @transform_2(%arg0: i32) -> (i32, i32) {
    %c0_i32 = arith.constant 0 : i32
    %c0_i32_0 = arith.constant 0 : i32
    return %arg0, %c0_i32 : i32, i32
  }
  func.func @transform_3(%arg0: i32) -> (i32, i32) {
    %c0_i32 = arith.constant 0 : i32
    %c0_i32_0 = arith.constant 0 : i32
    %c0_i32_1 = arith.constant 0 : i32
    return %c0_i32, %c0_i32_0 : i32, i32
  }
  func.func @transform_4(%arg0: i32) -> (i32, i32) {
    %c0_i32 = arith.constant 0 : i32
    %c0_i32_0 = arith.constant 0 : i32
    %c0_i32_1 = arith.constant 0 : i32
    return %c0_i32, %c0_i32_0 : i32, i32
  }
  func.func @transform_5(%arg0: i32) -> (i32, i32, i32) {
    %c0_i32 = arith.constant 0 : i32
    %c0_i32_0 = arith.constant 0 : i32
    %c0_i32_1 = arith.constant 0 : i32
    %c0_i32_2 = arith.constant 0 : i32
    return %c0_i32, %c0_i32_0, %c0_i32_1 : i32, i32, i32
  }
  func.func @transform_6(%arg0: i32) -> (i32, i32) {
    %c0_i32 = arith.constant 0 : i32
    %c0_i32_0 = arith.constant 0 : i32
    %c0_i32_1 = arith.constant 0 : i32
    return %c0_i32, %c0_i32_0 : i32, i32
  }
  func.func @transform_7(%arg0: i32) -> (i32, i32) {
    %c0_i32 = arith.constant 0 : i32
    %c0_i32_0 = arith.constant 0 : i32
    return %arg0, %c0_i32 : i32, i32
  }
}

</mosaic_0001>

<llo_original>
// kernel: tpu_custom_call.1
$region0: #{tpu_custom_call.1}
  #allocation0 [shape = 'u32[]', space=smem, size = 0x4, offset = 0x4, fixed_abs, tag = 'smem constant byte address 0x4 - core index']
  #allocation1 [shape = 'u32[144,128]{1,0:T(1,128)}', space=vmem, size = 0x12000, scoped, tag = 'internal scratch']
  %s0 = inlined_call_operand.vmem [shape: s32[16,20], index: 0, kind: input, shape index: {}]
  %s1 = inlined_call_operand.vmem [shape: s32[16,1], index: 1, kind: input, shape index: {}]
  %s2 = inlined_call_operand.vmem [shape: s32[16,1], index: 2, kind: input, shape index: {}]
  %s3 = inlined_call_operand.hbm [shape: f32[56,128], index: 3, kind: input, shape index: {}]
  %s4 = inlined_call_operand.vmem [shape: f32[16,128], index: 4, kind: input, shape index: {}]
  %s5 = inlined_call_operand.hbm [shape: f32[6,128,128], index: 5, kind: input, shape index: {}]
  %s6 = inlined_call_operand.vmem [shape: f32[4,128], index: 6, kind: input, shape index: {}]
  %s7 = inlined_call_operand.hbm [shape: f32[16,128], index: 7, kind: output, shape index: {}]
  %s8 = sld [smem:[#allocation0]]
  $region46: #{tpu_custom_call.1} parent=0
    _
  %s10 = ssub.s32 1, %s8
  %s11 = scalar_select 0, %s10, %s8
  $region1: #{tpu_custom_call.1} parent=0
    #allocation2 [shape = 'u8[28672]{0}', space=vmem, size = 0x7000, scoped, tag = 'input window, operand 3, single buffered']
    #allocation3 [shape = 's32[1]{0}', space=sflag, size = 0x4, scoped, tag = 'scoped memory for tpu_custom_call.1']
    #allocation4 [shape = 's32[1]{0}', space=sflag, size = 0x4, scoped, tag = 'scoped memory for tpu_custom_call.1']
    #allocation5 [shape = 'u8[393216]{0}', space=vmem, size = 0x60000, scoped, tag = 'input window, operand 5, single buffered']
    #allocation6 [shape = 's32[1]{0}', space=sflag, size = 0x4, scoped, tag = 'scoped memory for tpu_custom_call.1']
    #allocation7 [shape = 'u8[8192]{0}', space=vmem, size = 0x2000, scoped, tag = 'output window, operand 0, single buffered']
    %12 = vsyncpa [#allocation3], 0
    %13 = vsyncpa [#allocation6], 0
    %14 = vsyncpa [#allocation4], 0
    // Predicated region
    $region2: #{tpu_custom_call.1} parent=1 // pred_check
      _
    $region3: #{tpu_custom_call.1} parent=1 // pred_check_branch
      %16 = sbr.rel (0) target = $region5
    $region4: #{tpu_custom_call.1} parent=1 // pred_region
      _
    $region5: #{tpu_custom_call.1} parent=1 // pred_fallthru
      _
    // Predicated region
    $region6: #{tpu_custom_call.1} parent=1 // pred_check
      _
    $region7: #{tpu_custom_call.1} parent=1 // pred_check_branch
      %18 = sbr.rel (0) target = $region9
    $region8: #{tpu_custom_call.1} parent=1 // pred_region
      _
    $region9: #{tpu_custom_call.1} parent=1 // pred_fallthru
      _
    // Predicated region
    $region10: #{tpu_custom_call.1} parent=1 // pred_check
      _
    $region11: #{tpu_custom_call.1} parent=1 // pred_check_branch
      %20 = sbr.rel (0) target = $region13
    $region12: #{tpu_custom_call.1} parent=1 // pred_region
      _
    $region13: #{tpu_custom_call.1} parent=1 // pred_fallthru
      _
    // Predicated region
    $region14: #{tpu_custom_call.1} parent=1 // pred_check
      _
    $region15: #{tpu_custom_call.1} parent=1 // pred_check_branch
      %22 = sbr.rel (0) target = $region17
    $region16: #{tpu_custom_call.1} parent=1 // pred_region
      %s24 = ssub.s32 896, 896
      %25 = vsyncadd [#allocation3], %s24
      %s26 = sshll.u32 [#allocation2], 4
      %s27 = int_to_ptr.vmem [resolvable:$true] %s26
      %32 = dma.hbm_to_vmem [thread:$0]  %s3, 896, %s27, [#allocation3], 128, 128, 8
    $region17: #{tpu_custom_call.1} parent=1 // pred_fallthru
      _
    // Predicated region
    $region18: #{tpu_custom_call.1} parent=1 // pred_check
      _
    $region19: #{tpu_custom_call.1} parent=1 // pred_check_branch
      %34 = sbr.rel (0) target = $region21
    $region20: #{tpu_custom_call.1} parent=1 // pred_region
      _
    $region21: #{tpu_custom_call.1} parent=1 // pred_fallthru
      _
    // Predicated region
    $region22: #{tpu_custom_call.1} parent=1 // pred_check
      _
    $region23: #{tpu_custom_call.1} parent=1 // pred_check_branch
      %36 = sbr.rel (0) target = $region25
    $region24: #{tpu_custom_call.1} parent=1 // pred_region
      %s38 = ssub.s32 12288, 12288
      %39 = vsyncadd [#allocation6], %s38
      %s40 = sshll.u32 [#allocation5], 4
      %s41 = int_to_ptr.vmem [resolvable:$true] %s40
      %46 = dma.hbm_to_vmem [thread:$0]  %s5, 12288, %s41, [#allocation6], 128, 128, 8
    $region25: #{tpu_custom_call.1} parent=1 // pred_fallthru
      _
    // Predicated region
    $region26: #{tpu_custom_call.1} parent=1 // pred_check
      _
    $region27: #{tpu_custom_call.1} parent=1 // pred_check_branch
      %48 = sbr.rel (0) target = $region29
    $region28: #{tpu_custom_call.1} parent=1 // pred_region
      _
    $region29: #{tpu_custom_call.1} parent=1 // pred_fallthru
      _
    // Predicated region
    $region30: #{tpu_custom_call.1} parent=1 // pred_check
      _
    $region31: #{tpu_custom_call.1} parent=1 // pred_check_branch
      %50 = sbr.rel (0) target = $region33
    $region32: #{tpu_custom_call.1} parent=1 // pred_region
      %51 = dma.done [#allocation3], 896
    $region33: #{tpu_custom_call.1} parent=1 // pred_fallthru
      _
    // Predicated region
    $region34: #{tpu_custom_call.1} parent=1 // pred_check
      _
    $region35: #{tpu_custom_call.1} parent=1 // pred_check_branch
      %53 = sbr.rel (0) target = $region37
    $region36: #{tpu_custom_call.1} parent=1 // pred_region
      %54 = dma.done [#allocation6], 12288
    $region37: #{tpu_custom_call.1} parent=1 // pred_fallthru
      _
    %v55 = vld [vmem:[%s6] sm:$0xf]
    %v56 = vld [vmem:[#allocation2] sm:$0xff]
    %v57 = vld [vmem:[#allocation2 + $0x8] sm:$0xff]
    %v58 = vld [vmem:[#allocation2 + $0x10] sm:$0xff]
    %v59 = vld [vmem:[#allocation2 + $0x18] sm:$0xff]
    %v60 = vld [vmem:[#allocation2 + $0x20] sm:$0xff]
    %v61 = vld [vmem:[#allocation2 + $0x28] sm:$0xff]
    %v62 = vld [vmem:[#allocation2 + $0x30] sm:$0xff]
    %v63 = vld [vmem:[%s4] sm:$0xff]
    %v64 = vld [vmem:[%s4 + $0x8] sm:$0xff]
    %v65 = vld [vmem:[#allocation5] sm:$0xff]
    %v66 = vld [vmem:[#allocation5 + $0x8] sm:$0xff]
    %v67 = vld [vmem:[#allocation5 + $0x10] sm:$0xff]
    %v68 = vld [vmem:[#allocation5 + $0x18] sm:$0xff]
    %v69 = vld [vmem:[#allocation5 + $0x20] sm:$0xff]
    %v70 = vld [vmem:[#allocation5 + $0x28] sm:$0xff]
    %v71 = vld [vmem:[#allocation5 + $0x30] sm:$0xff]
    %v72 = vld [vmem:[#allocation5 + $0x38] sm:$0xff]
    %v73 = vld [vmem:[#allocation5 + $0x40] sm:$0xff]
    %v74 = vld [vmem:[#allocation5 + $0x48] sm:$0xff]
    %v75 = vld [vmem:[#allocation5 + $0x50] sm:$0xff]
    %v76 = vld [vmem:[#allocation5 + $0x58] sm:$0xff]
    %v77 = vld [vmem:[#allocation5 + $0x60] sm:$0xff]
    %v78 = vld [vmem:[#allocation5 + $0x68] sm:$0xff]
    %v79 = vld [vmem:[#allocation5 + $0x70] sm:$0xff]
    %v80 = vld [vmem:[#allocation5 + $0x78] sm:$0xff]
    %v81 = vlaneseq
    %v82 = vshrl.u32 %v81, 7
    %v83 = vsub.s32 0, %v82
    %v84 = vrot.slane %v55, %v83
    %85 = vmatprep.subr.mxu0 0.0
    %86 = vmatpush1.msra.mxu0 %v65
    %87 = vmatprep.subr.mxu0 0.0
    %88 = vmatpush1.msra.mxu0 %v66
    %89 = vmatprep.subr.mxu0 0.0
    %90 = vmatpush1.msra.mxu0 %v67
    %91 = vmatprep.subr.mxu0 0.0
    %92 = vmatpush1.msra.mxu0 %v68
    %93 = vmatprep.subr.mxu0 0.0
    %94 = vmatpush1.msra.mxu0 %v69
    %95 = vmatprep.subr.mxu0 0.0
    %96 = vmatpush1.msra.mxu0 %v70
    %97 = vmatprep.subr.mxu0 0.0
    %98 = vmatpush1.msra.mxu0 %v71
    %99 = vmatprep.subr.mxu0 0.0
    %100 = vmatpush1.msra.mxu0 %v72
    %101 = vmatprep.subr.mxu0 0.0
    %102 = vmatpush1.msra.mxu0 %v73
    %103 = vmatprep.subr.mxu0 0.0
    %104 = vmatpush1.msra.mxu0 %v74
    %105 = vmatprep.subr.mxu0 0.0
    %106 = vmatpush1.msra.mxu0 %v75
    %107 = vmatprep.subr.mxu0 0.0
    %108 = vmatpush1.msra.mxu0 %v76
    %109 = vmatprep.subr.mxu0 0.0
    %110 = vmatpush1.msra.mxu0 %v77
    %111 = vmatprep.subr.mxu0 0.0
    %112 = vmatpush1.msra.mxu0 %v78
    %113 = vmatprep.subr.mxu0 0.0
    %114 = vmatpush1.msra.mxu0 %v79
    %115 = vmatprep.subr.mxu0 0.0
    %116 = vmatpush1.msra.mxu0 %v80
    %117 = vmatprep.subr.mxu0 0.0
    %118 = vmatpush1.msra.mxu0 0.0
    %119 = vmatprep.subr.mxu0 0.0
    %120 = vmatpush1.msra.mxu0 0.0
    %121 = vmatprep.subr.mxu0 0.0
    %122 = vmatpush1.msra.mxu0 0.0
    %123 = vmatprep.subr.mxu0 0.0
    %124 = vmatpush1.msra.mxu0 0.0
    %125 = vmatprep.subr.mxu0 0.0
    %126 = vmatpush1.msra.mxu0 0.0
    %127 = vmatprep.subr.mxu0 0.0
    %128 = vmatpush1.msra.mxu0 0.0
    %129 = vmatprep.subr.mxu0 0.0
    %130 = vmatpush1.msra.mxu0 0.0
    %131 = vmatprep.subr.mxu0 0.0
    %132 = vmatpush1.msra.mxu0 0.0
    %133 = vmatprep.subr.mxu0 0.0
    %134 = vmatpush1.msra.mxu0 0.0
    %135 = vmatprep.subr.mxu0 0.0
    %136 = vmatpush1.msra.mxu0 0.0
    %137 = vmatprep.subr.mxu0 0.0
    %138 = vmatpush1.msra.mxu0 0.0
    %139 = vmatprep.subr.mxu0 0.0
    %140 = vmatpush1.msra.mxu0 0.0
    %141 = vmatprep.subr.mxu0 0.0
    %142 = vmatpush1.msra.mxu0 0.0
    %143 = vmatprep.subr.mxu0 0.0
    %144 = vmatpush1.msra.mxu0 0.0
    %145 = vmatprep.subr.mxu0 0.0
    %146 = vmatpush1.msra.mxu0 0.0
    %147 = vmatprep.subr.mxu0 0.0
    %148 = vmatpush1.msra.mxu0 0.0
    %149 = vmatprep.mubr.f32.mxu0 0.0
    %150 = vmatmul.mubr.f32.gmra.mrb[0].mxu0 %v56
    %v151 = vpop.f32.mrb[0].mxu0
    %v152 = vadd.f32 %v84, %v151
    %v153 = vpop.f32.mrb[0].mxu0
    %154 = vmatprep.mubr.f32.mxu0 0.0
    %155 = vmatmul.mubr.f32.gmra.mrb[0].mxu0 %v57
    %v156 = vpop.f32.mrb[0].mxu0
    %v157 = vadd.f32 %v84, %v156
    %v158 = vpop.f32.mrb[0].mxu0
    %159 = vmatprep.mubr.f32.mxu0 0.0
    %160 = vmatmul.mubr.f32.gmra.mrb[0].mxu0 %v58
    %v161 = vpop.f32.mrb[0].mxu0
    %v162 = vadd.f32 %v84, %v161
    %v163 = vpop.f32.mrb[0].mxu0
    %164 = vmatprep.mubr.f32.mxu0 0.0
    %165 = vmatmul.mubr.f32.gmra.mrb[0].mxu0 %v59
    %v166 = vpop.f32.mrb[0].mxu0
    %v167 = vadd.f32 %v84, %v166
    %v168 = vpop.f32.mrb[0].mxu0
    %169 = vmatprep.mubr.f32.mxu0 0.0
    %170 = vmatmul.mubr.f32.gmra.mrb[0].mxu0 %v60
    %v171 = vpop.f32.mrb[0].mxu0
    %v172 = vadd.f32 %v84, %v171
    %v173 = vpop.f32.mrb[0].mxu0
    %174 = vmatprep.mubr.f32.mxu0 0.0
    %175 = vmatmul.mubr.f32.gmra.mrb[0].mxu0 %v61
    %v176 = vpop.f32.mrb[0].mxu0
    %v177 = vadd.f32 %v84, %v176
    %v178 = vpop.f32.mrb[0].mxu0
    %179 = vmatprep.mubr.f32.mxu0 0.0
    %180 = vmatmul.mubr.f32.gmra.mrb[0].mxu0 %v62
    %v181 = vpop.f32.mrb[0].mxu0
    %v182 = vadd.f32 %v84, %v181
    %v183 = vpop.f32.mrb[0].mxu0
    %184 = vdwg.mxu0
    %v185 = vmax.f32 %v152, 0.0
    %v186 = vmax.f32 %v157, 0.0
    %v187 = vmax.f32 %v162, 0.0
    %v188 = vmax.f32 %v167, 0.0
    %v189 = vmax.f32 %v172, 0.0
    %v190 = vmax.f32 %v177, 0.0
    %v191 = vmax.f32 %v182, 0.0
    %v192 = vld [vmem:[%s0] sm:$0xff]
    %v193 = vld [vmem:[%s0 + $0x8] sm:$0xff]
    %v194 = vlaneseq
    %v195 = vand.u32 %v194, 127
    %196 = vset.pattern.permute.xlu0 0
    %197 = vperm.xlu0 %196, %v192
    %v198 = vpop.permute.xlu0 %197
    %199 = vset.pattern.permute.xlu0 0
    %200 = vperm.xlu0 %199, %v193
    %v201 = vpop.permute.xlu0 %200
    %vm202 = vcmp.eq.s32.totalorder %v198, %v195
    %vm203 = vcmp.eq.s32.totalorder %v201, %v195
    %v204 = vsel %vm202, 1, 0
    %v205 = vsel %vm203, 1, 0
    %v206 = vcvt.s32.f32 %v204
    %v207 = vcvt.s32.f32 %v205
    %v208 = vadd.f32 %v206, 0.0
    %v209 = vadd.f32 %v207, 0.0
    %210 = vset.pattern.permute.xlu0 1
    %211 = vperm.xlu0 %210, %v192
    %v212 = vpop.permute.xlu0 %211
    %213 = vset.pattern.permute.xlu0 1
    %214 = vperm.xlu0 %213, %v193
    %v215 = vpop.permute.xlu0 %214
    %vm216 = vcmp.eq.s32.totalorder %v212, %v195
    %vm217 = vcmp.eq.s32.totalorder %v215, %v195
    %v218 = vsel %vm216, 1, 0
    %v219 = vsel %vm217, 1, 0
    %v220 = vcvt.s32.f32 %v218
    %v221 = vcvt.s32.f32 %v219
    %v222 = vadd.f32 %v208, %v220
    %v223 = vadd.f32 %v209, %v221
    %224 = vset.pattern.permute.xlu0 2
    %225 = vperm.xlu0 %224, %v192
    %v226 = vpop.permute.xlu0 %225
    %227 = vset.pattern.permute.xlu0 2
    %228 = vperm.xlu0 %227, %v193
    %v229 = vpop.permute.xlu0 %228
    %vm230 = vcmp.eq.s32.totalorder %v226, %v195
    %vm231 = vcmp.eq.s32.totalorder %v229, %v195
    %v232 = vsel %vm230, 1, 0
    %v233 = vsel %vm231, 1, 0
    %v234 = vcvt.s32.f32 %v232
    %v235 = vcvt.s32.f32 %v233
    %v236 = vadd.f32 %v222, %v234
    %v237 = vadd.f32 %v223, %v235
    %238 = vset.pattern.permute.xlu0 3
    %239 = vperm.xlu0 %238, %v192
    %v240 = vpop.permute.xlu0 %239
    %241 = vset.pattern.permute.xlu0 3
    %242 = vperm.xlu0 %241, %v193
    %v243 = vpop.permute.xlu0 %242
    %vm244 = vcmp.eq.s32.totalorder %v240, %v195
    %vm245 = vcmp.eq.s32.totalorder %v243, %v195
    %v246 = vsel %vm244, 1, 0
    %v247 = vsel %vm245, 1, 0
    %v248 = vcvt.s32.f32 %v246
    %v249 = vcvt.s32.f32 %v247
    %v250 = vadd.f32 %v236, %v248
    %v251 = vadd.f32 %v237, %v249
    %252 = vset.pattern.permute.xlu0 4
    %253 = vperm.xlu0 %252, %v192
    %v254 = vpop.permute.xlu0 %253
    %255 = vset.pattern.permute.xlu0 4
    %256 = vperm.xlu0 %255, %v193
    %v257 = vpop.permute.xlu0 %256
    %vm258 = vcmp.eq.s32.totalorder %v254, %v195
    %vm259 = vcmp.eq.s32.totalorder %v257, %v195
    %v260 = vsel %vm258, 1, 0
    %v261 = vsel %vm259, 1, 0
    %v262 = vcvt.s32.f32 %v260
    %v263 = vcvt.s32.f32 %v261
    %v264 = vadd.f32 %v250, %v262
    %v265 = vadd.f32 %v251, %v263
    %266 = vset.pattern.permute.xlu0 5
    %267 = vperm.xlu0 %266, %v192
    %v268 = vpop.permute.xlu0 %267
    %269 = vset.pattern.permute.xlu0 5
    %270 = vperm.xlu0 %269, %v193
    %v271 = vpop.permute.xlu0 %270
    %vm272 = vcmp.eq.s32.totalorder %v268, %v195
    %vm273 = vcmp.eq.s32.totalorder %v271, %v195
    %v274 = vsel %vm272, 1, 0
    %v275 = vsel %vm273, 1, 0
    %v276 = vcvt.s32.f32 %v274
    %v277 = vcvt.s32.f32 %v275
    %v278 = vadd.f32 %v264, %v276
    %v279 = vadd.f32 %v265, %v277
    %280 = vset.pattern.permute.xlu0 6
    %281 = vperm.xlu0 %280, %v192
    %v282 = vpop.permute.xlu0 %281
    %283 = vset.pattern.permute.xlu0 6
    %284 = vperm.xlu0 %283, %v193
    %v285 = vpop.permute.xlu0 %284
    %vm286 = vcmp.eq.s32.totalorder %v282, %v195
    %vm287 = vcmp.eq.s32.totalorder %v285, %v195
    %v288 = vsel %vm286, 1, 0
    %v289 = vsel %vm287, 1, 0
    %v290 = vcvt.s32.f32 %v288
    %v291 = vcvt.s32.f32 %v289
    %v292 = vadd.f32 %v278, %v290
    %v293 = vadd.f32 %v279, %v291
    %294 = vset.pattern.permute.xlu0 7
    %295 = vperm.xlu0 %294, %v192
    %v296 = vpop.permute.xlu0 %295
    %297 = vset.pattern.permute.xlu0 7
    %298 = vperm.xlu0 %297, %v193
    %v299 = vpop.permute.xlu0 %298
    %vm300 = vcmp.eq.s32.totalorder %v296, %v195
    %vm301 = vcmp.eq.s32.totalorder %v299, %v195
    %v302 = vsel %vm300, 1, 0
    %v303 = vsel %vm301, 1, 0
    %v304 = vcvt.s32.f32 %v302
    %v305 = vcvt.s32.f32 %v303
    %v306 = vadd.f32 %v292, %v304
    %v307 = vadd.f32 %v293, %v305
    %308 = vset.pattern.permute.xlu0 8
    %309 = vperm.xlu0 %308, %v192
    %v310 = vpop.permute.xlu0 %309
    %311 = vset.pattern.permute.xlu0 8
    %312 = vperm.xlu0 %311, %v193
    %v313 = vpop.permute.xlu0 %312
    %vm314 = vcmp.eq.s32.totalorder %v310, %v195
    %vm315 = vcmp.eq.s32.totalorder %v313, %v195
    %v316 = vsel %vm314, 1, 0
    %v317 = vsel %vm315, 1, 0
    %v318 = vcvt.s32.f32 %v316
    %v319 = vcvt.s32.f32 %v317
    %v320 = vadd.f32 %v306, %v318
    %v321 = vadd.f32 %v307, %v319
    %322 = vset.pattern.permute.xlu0 9
    %323 = vperm.xlu0 %322, %v192
    %v324 = vpop.permute.xlu0 %323
    %325 = vset.pattern.permute.xlu0 9
    %326 = vperm.xlu0 %325, %v193
    %v327 = vpop.permute.xlu0 %326
    %vm328 = vcmp.eq.s32.totalorder %v324, %v195
    %vm329 = vcmp.eq.s32.totalorder %v327, %v195
    %v330 = vsel %vm328, 1, 0
    %v331 = vsel %vm329, 1, 0
    %v332 = vcvt.s32.f32 %v330
    %v333 = vcvt.s32.f32 %v331
    %v334 = vadd.f32 %v320, %v332
    %v335 = vadd.f32 %v321, %v333
    %336 = vset.pattern.permute.xlu0 10
    %337 = vperm.xlu0 %336, %v192
    %v338 = vpop.permute.xlu0 %337
    %339 = vset.pattern.permute.xlu0 10
    %340 = vperm.xlu0 %339, %v193
    %v341 = vpop.permute.xlu0 %340
    %vm342 = vcmp.eq.s32.totalorder %v338, %v195
    %vm343 = vcmp.eq.s32.totalorder %v341, %v195
    %v344 = vsel %vm342, 1, 0
    %v345 = vsel %vm343, 1, 0
    %v346 = vcvt.s32.f32 %v344
    %v347 = vcvt.s32.f32 %v345
    %v348 = vadd.f32 %v334, %v346
    %v349 = vadd.f32 %v335, %v347
    %350 = vset.pattern.permute.xlu0 11
    %351 = vperm.xlu0 %350, %v192
    %v352 = vpop.permute.xlu0 %351
    %353 = vset.pattern.permute.xlu0 11
    %354 = vperm.xlu0 %353, %v193
    %v355 = vpop.permute.xlu0 %354
    %vm356 = vcmp.eq.s32.totalorder %v352, %v195
    %vm357 = vcmp.eq.s32.totalorder %v355, %v195
    %v358 = vsel %vm356, 1, 0
    %v359 = vsel %vm357, 1, 0
    %v360 = vcvt.s32.f32 %v358
    %v361 = vcvt.s32.f32 %v359
    %v362 = vadd.f32 %v348, %v360
    %v363 = vadd.f32 %v349, %v361
    %364 = vset.pattern.permute.xlu0 12
    %365 = vperm.xlu0 %364, %v192
    %v366 = vpop.permute.xlu0 %365
    %367 = vset.pattern.permute.xlu0 12
    %368 = vperm.xlu0 %367, %v193
    %v369 = vpop.permute.xlu0 %368
    %vm370 = vcmp.eq.s32.totalorder %v366, %v195
    %vm371 = vcmp.eq.s32.totalorder %v369, %v195
    %v372 = vsel %vm370, 1, 0
    %v373 = vsel %vm371, 1, 0
    %v374 = vcvt.s32.f32 %v372
    %v375 = vcvt.s32.f32 %v373
    %v376 = vadd.f32 %v362, %v374
    %v377 = vadd.f32 %v363, %v375
    %378 = vset.pattern.permute.xlu0 13
    %379 = vperm.xlu0 %378, %v192
    %v380 = vpop.permute.xlu0 %379
    %381 = vset.pattern.permute.xlu0 13
    %382 = vperm.xlu0 %381, %v193
    %v383 = vpop.permute.xlu0 %382
    %vm384 = vcmp.eq.s32.totalorder %v380, %v195
    %vm385 = vcmp.eq.s32.totalorder %v383, %v195
    %v386 = vsel %vm384, 1, 0
    %v387 = vsel %vm385, 1, 0
    %v388 = vcvt.s32.f32 %v386
    %v389 = vcvt.s32.f32 %v387
    %v390 = vadd.f32 %v376, %v388
    %v391 = vadd.f32 %v377, %v389
    %392 = vset.pattern.permute.xlu0 14
    %393 = vperm.xlu0 %392, %v192
    %v394 = vpop.permute.xlu0 %393
    %395 = vset.pattern.permute.xlu0 14
    %396 = vperm.xlu0 %395, %v193
    %v397 = vpop.permute.xlu0 %396
    %vm398 = vcmp.eq.s32.totalorder %v394, %v195
    %vm399 = vcmp.eq.s32.totalorder %v397, %v195
    %v400 = vsel %vm398, 1, 0
    %v401 = vsel %vm399, 1, 0
    %v402 = vcvt.s32.f32 %v400
    %v403 = vcvt.s32.f32 %v401
    %v404 = vadd.f32 %v390, %v402
    %v405 = vadd.f32 %v391, %v403
    %406 = vset.pattern.permute.xlu0 15
    %407 = vperm.xlu0 %406, %v192
    %v408 = vpop.permute.xlu0 %407
    %409 = vset.pattern.permute.xlu0 15
    %410 = vperm.xlu0 %409, %v193
    %v411 = vpop.permute.xlu0 %410
    %vm412 = vcmp.eq.s32.totalorder %v408, %v195
    %vm413 = vcmp.eq.s32.totalorder %v411, %v195
    %v414 = vsel %vm412, 1, 0
    %v415 = vsel %vm413, 1, 0
    %v416 = vcvt.s32.f32 %v414
    %v417 = vcvt.s32.f32 %v415
    %v418 = vadd.f32 %v404, %v416
    %v419 = vadd.f32 %v405, %v417
    %420 = vset.pattern.permute.xlu0 16
    %421 = vperm.xlu0 %420, %v192
    %v422 = vpop.permute.xlu0 %421
    %423 = vset.pattern.permute.xlu0 16
    %424 = vperm.xlu0 %423, %v193
    %v425 = vpop.permute.xlu0 %424
    %vm426 = vcmp.eq.s32.totalorder %v422, %v195
    %vm427 = vcmp.eq.s32.totalorder %v425, %v195
    %v428 = vsel %vm426, 1, 0
    %v429 = vsel %vm427, 1, 0
    %v430 = vcvt.s32.f32 %v428
    %v431 = vcvt.s32.f32 %v429
    %v432 = vadd.f32 %v418, %v430
    %v433 = vadd.f32 %v419, %v431
    %434 = vset.pattern.permute.xlu0 17
    %435 = vperm.xlu0 %434, %v192
    %v436 = vpop.permute.xlu0 %435
    %437 = vset.pattern.permute.xlu0 17
    %438 = vperm.xlu0 %437, %v193
    %v439 = vpop.permute.xlu0 %438
    %vm440 = vcmp.eq.s32.totalorder %v436, %v195
    %vm441 = vcmp.eq.s32.totalorder %v439, %v195
    %v442 = vsel %vm440, 1, 0
    %v443 = vsel %vm441, 1, 0
    %v444 = vcvt.s32.f32 %v442
    %v445 = vcvt.s32.f32 %v443
    %v446 = vadd.f32 %v432, %v444
    %v447 = vadd.f32 %v433, %v445
    %448 = vset.pattern.permute.xlu0 18
    %449 = vperm.xlu0 %448, %v192
    %v450 = vpop.permute.xlu0 %449
    %451 = vset.pattern.permute.xlu0 18
    %452 = vperm.xlu0 %451, %v193
    %v453 = vpop.permute.xlu0 %452
    %vm454 = vcmp.eq.s32.totalorder %v450, %v195
    %vm455 = vcmp.eq.s32.totalorder %v453, %v195
    %v456 = vsel %vm454, 1, 0
    %v457 = vsel %vm455, 1, 0
    %v458 = vcvt.s32.f32 %v456
    %v459 = vcvt.s32.f32 %v457
    %v460 = vadd.f32 %v446, %v458
    %v461 = vadd.f32 %v447, %v459
    %462 = vset.pattern.permute.xlu0 19
    %463 = vperm.xlu0 %462, %v192
    %v464 = vpop.permute.xlu0 %463
    %465 = vset.pattern.permute.xlu0 19
    %466 = vperm.xlu0 %465, %v193
    %v467 = vpop.permute.xlu0 %466
    %vm468 = vcmp.eq.s32.totalorder %v464, %v195
    %vm469 = vcmp.eq.s32.totalorder %v467, %v195
    %v470 = vsel %vm468, 1, 0
    %v471 = vsel %vm469, 1, 0
    %v472 = vcvt.s32.f32 %v470
    %v473 = vcvt.s32.f32 %v471
    %v474 = vadd.f32 %v460, %v472
    %v475 = vadd.f32 %v461, %v473
    %vm476 = vcmask 457728
    %v478 = vsel %vm476, %v474, 0
    %v481 = vsel %vm476, %v475, 0
    %483 = vmatprep.subr.mxu0 0.0
    %484 = vmatpush1.msra.mxu0 %v185
    %485 = vmatprep.subr.mxu0 0.0
    %486 = vmatpush1.msra.mxu0 %v186
    %487 = vmatprep.subr.mxu0 0.0
    %488 = vmatpush1.msra.mxu0 %v187
    %489 = vmatprep.subr.mxu0 0.0
    %490 = vmatpush1.msra.mxu0 %v188
    %491 = vmatprep.subr.mxu0 0.0
    %492 = vmatpush1.msra.mxu0 %v189
    %493 = vmatprep.subr.mxu0 0.0
    %494 = vmatpush1.msra.mxu0 %v190
    %495 = vmatprep.subr.mxu0 0.0
    %496 = vmatpush1.msra.mxu0 %v191
    %497 = vmatprep.subr.mxu0 0.0
    %498 = vmatpush1.msra.mxu0 0.0
    %499 = vmatprep.subr.mxu0 0.0
    %500 = vmatpush1.msra.mxu0 0.0
    %501 = vmatprep.subr.mxu0 0.0
    %502 = vmatpush1.msra.mxu0 0.0
    %503 = vmatprep.subr.mxu0 0.0
    %504 = vmatpush1.msra.mxu0 0.0
    %505 = vmatprep.subr.mxu0 0.0
    %506 = vmatpush1.msra.mxu0 0.0
    %507 = vmatprep.subr.mxu0 0.0
    %508 = vmatpush1.msra.mxu0 0.0
    %509 = vmatprep.subr.mxu0 0.0
    %510 = vmatpush1.msra.mxu0 0.0
    %511 = vmatprep.subr.mxu0 0.0
    %512 = vmatpush1.msra.mxu0 0.0
    %513 = vmatprep.subr.mxu0 0.0
    %514 = vmatpush1.msra.mxu0 0.0
    %515 = vmatprep.subr.mxu0 0.0
    %516 = vmatpush1.msra.mxu0 0.0
    %517 = vmatprep.subr.mxu0 0.0
    %518 = vmatpush1.msra.mxu0 0.0
    %519 = vmatprep.subr.mxu0 0.0
    %520 = vmatpush1.msra.mxu0 0.0
    %521 = vmatprep.subr.mxu0 0.0
    %522 = vmatpush1.msra.mxu0 0.0
    %523 = vmatprep.subr.mxu0 0.0
    %524 = vmatpush1.msra.mxu0 0.0
    %525 = vmatprep.subr.mxu0 0.0
    %526 = vmatpush1.msra.mxu0 0.0
    %527 = vmatprep.subr.mxu0 0.0
    %528 = vmatpush1.msra.mxu0 0.0
    %529 = vmatprep.subr.mxu0 0.0
    %530 = vmatpush1.msra.mxu0 0.0
    %531 = vmatprep.subr.mxu0 0.0
    %532 = vmatpush1.msra.mxu0 0.0
    %533 = vmatprep.subr.mxu0 0.0
    %534 = vmatpush1.msra.mxu0 0.0
    %535 = vmatprep.subr.mxu0 0.0
    %536 = vmatpush1.msra.mxu0 0.0
    %537 = vmatprep.subr.mxu0 0.0
    %538 = vmatpush1.msra.mxu0 0.0
    %539 = vmatprep.subr.mxu0 0.0
    %540 = vmatpush1.msra.mxu0 0.0
    %541 = vmatprep.subr.mxu0 0.0
    %542 = vmatpush1.msra.mxu0 0.0
    %543 = vmatprep.subr.mxu0 0.0
    %544 = vmatpush1.msra.mxu0 0.0
    %545 = vmatprep.subr.mxu0 0.0
    %546 = vmatpush1.msra.mxu0 0.0
    %547 = vmatprep.mubr.f32.mxu0 0.0
    %548 = vmatmul.mubr.f32.gmra.mrb[0].mxu0 %v478
    %v549 = vpop.f32.mrb[0].mxu0
    %v550 = vadd.f32 0.0, %v549
    %v551 = vpop.f32.mrb[0].mxu0
    %552 = vmatprep.mubr.f32.mxu0 0.0
    %553 = vmatmul.mubr.f32.gmra.mrb[0].mxu0 %v481
    %v554 = vpop.f32.mrb[0].mxu0
    %v555 = vadd.f32 0.0, %v554
    %v556 = vpop.f32.mrb[0].mxu0
    %557 = vdwg.mxu0
    %v558 = vmul.f32 %v550, 0.05
    %v559 = vmul.f32 %v555, 0.05
    %v560 = vand.u32 2147483647, %v558
    %v561 = vand.u32 2147483647, %v559
    %562 = vadd.xlane.f32.xlu0 %v560
    %v563 = vpop.xlane.xlu0 %562
    %564 = vadd.xlane.f32.xlu0 %v561
    %v565 = vpop.xlane.xlu0 %564
    %v566 = vmax.f32 %v563, 1e-12
    %v567 = vmax.f32 %v565, 1e-12
    %v568 = vrcp.pop %v566
    %v569 = vmul.f32 %v558, %v568
    %v570 = vrcp.pop %v567
    %v571 = vmul.f32 %v559, %v570
    %v572 = vld [vmem:[%s1] sm:$0xff]
    %v573 = vld [vmem:[%s1 + $0x8] sm:$0xff]
    %574 = vset.pattern.permute.xlu0 0
    %575 = vperm.xlu0 %574, %v572
    %v576 = vpop.permute.xlu0 %575
    %577 = vset.pattern.permute.xlu0 0
    %578 = vperm.xlu0 %577, %v573
    %v579 = vpop.permute.xlu0 %578
    %vm580 = vcmp.eq.s32.totalorder %v576, %v195
    %vm581 = vcmp.eq.s32.totalorder %v579, %v195
    %v582 = vsel %vm580, 1, 0
    %v583 = vsel %vm581, 1, 0
    %v584 = vcvt.s32.f32 %v582
    %v585 = vcvt.s32.f32 %v583
    %vm586 = vcmask 130048
    %v588 = vsel %vm586, %v584, 0
    %v591 = vsel %vm586, %v585, 0
    %593 = vmatprep.subr.mxu0 0.0
    %594 = vmatpush1.msra.mxu0 %v63
    %595 = vmatprep.subr.mxu0 0.0
    %596 = vmatpush1.msra.mxu0 %v64
    %597 = vmatprep.subr.mxu0 0.0
    %598 = vmatpush1.msra.mxu0 0.0
    %599 = vmatprep.subr.mxu0 0.0
    %600 = vmatpush1.msra.mxu0 0.0
    %601 = vmatprep.subr.mxu0 0.0
    %602 = vmatpush1.msra.mxu0 0.0
    %603 = vmatprep.subr.mxu0 0.0
    %604 = vmatpush1.msra.mxu0 0.0
    %605 = vmatprep.subr.mxu0 0.0
    %606 = vmatpush1.msra.mxu0 0.0
    %607 = vmatprep.subr.mxu0 0.0
    %608 = vmatpush1.msra.mxu0 0.0
    %609 = vmatprep.subr.mxu0 0.0
    %610 = vmatpush1.msra.mxu0 0.0
    %611 = vmatprep.subr.mxu0 0.0
    %612 = vmatpush1.msra.mxu0 0.0
    %613 = vmatprep.subr.mxu0 0.0
    %614 = vmatpush1.msra.mxu0 0.0
    %615 = vmatprep.subr.mxu0 0.0
    %616 = vmatpush1.msra.mxu0 0.0
    %617 = vmatprep.subr.mxu0 0.0
    %618 = vmatpush1.msra.mxu0 0.0
    %619 = vmatprep.subr.mxu0 0.0
    %620 = vmatpush1.msra.mxu0 0.0
    %621 = vmatprep.subr.mxu0 0.0
    %622 = vmatpush1.msra.mxu0 0.0
    %623 = vmatprep.subr.mxu0 0.0
    %624 = vmatpush1.msra.mxu0 0.0
    %625 = vmatprep.subr.mxu0 0.0
    %626 = vmatpush1.msra.mxu0 0.0
    %627 = vmatprep.subr.mxu0 0.0
    %628 = vmatpush1.msra.mxu0 0.0
    %629 = vmatprep.subr.mxu0 0.0
    %630 = vmatpush1.msra.mxu0 0.0
    %631 = vmatprep.subr.mxu0 0.0
    %632 = vmatpush1.msra.mxu0 0.0
    %633 = vmatprep.subr.mxu0 0.0
    %634 = vmatpush1.msra.mxu0 0.0
    %635 = vmatprep.subr.mxu0 0.0
    %636 = vmatpush1.msra.mxu0 0.0
    %637 = vmatprep.subr.mxu0 0.0
    %638 = vmatpush1.msra.mxu0 0.0
    %639 = vmatprep.subr.mxu0 0.0
    %640 = vmatpush1.msra.mxu0 0.0
    %641 = vmatprep.subr.mxu0 0.0
    %642 = vmatpush1.msra.mxu0 0.0
    %643 = vmatprep.subr.mxu0 0.0
    %644 = vmatpush1.msra.mxu0 0.0
    %645 = vmatprep.subr.mxu0 0.0
    %646 = vmatpush1.msra.mxu0 0.0
    %647 = vmatprep.subr.mxu0 0.0
    %648 = vmatpush1.msra.mxu0 0.0
    %649 = vmatprep.subr.mxu0 0.0
    %650 = vmatpush1.msra.mxu0 0.0
    %651 = vmatprep.subr.mxu0 0.0
    %652 = vmatpush1.msra.mxu0 0.0
    %653 = vmatprep.subr.mxu0 0.0
    %654 = vmatpush1.msra.mxu0 0.0
    %655 = vmatprep.subr.mxu0 0.0
    %656 = vmatpush1.msra.mxu0 0.0
    %657 = vmatprep.mubr.f32.mxu0 0.0
    %658 = vmatmul.mubr.f32.gmra.mrb[0].mxu0 %v588
    %v659 = vpop.f32.mrb[0].mxu0
    %v660 = vadd.f32 0.0, %v659
    %v661 = vpop.f32.mrb[0].mxu0
    %662 = vmatprep.mubr.f32.mxu0 0.0
    %663 = vmatmul.mubr.f32.gmra.mrb[0].mxu0 %v591
    %v664 = vpop.f32.mrb[0].mxu0
    %v665 = vadd.f32 0.0, %v664
    %v666 = vpop.f32.mrb[0].mxu0
    %667 = vdwg.mxu0
    %s668 = scalar_lea.vmem [#allocation5], 128
    %v669 = vld [vmem:[%s668] sm:$0xff]
    %v670 = vld [vmem:[%s668 + $0x8] sm:$0xff]
    %v671 = vld [vmem:[%s668 + $0x10] sm:$0xff]
    %v672 = vld [vmem:[%s668 + $0x18] sm:$0xff]
    %v673 = vld [vmem:[%s668 + $0x20] sm:$0xff]
    %v674 = vld [vmem:[%s668 + $0x28] sm:$0xff]
    %v675 = vld [vmem:[%s668 + $0x30] sm:$0xff]
    %v676 = vld [vmem:[%s668 + $0x38] sm:$0xff]
    %v677 = vld [vmem:[%s668 + $0x40] sm:$0xff]
    %v678 = vld [vmem:[%s668 + $0x48] sm:$0xff]
    %v679 = vld [vmem:[%s668 + $0x50] sm:$0xff]
    %v680 = vld [vmem:[%s668 + $0x58] sm:$0xff]
    %v681 = vld [vmem:[%s668 + $0x60] sm:$0xff]
    %v682 = vld [vmem:[%s668 + $0x68] sm:$0xff]
    %v683 = vld [vmem:[%s668 + $0x70] sm:$0xff]
    %v684 = vld [vmem:[%s668 + $0x78] sm:$0xff]
    %s685 = scalar_lea.vmem [#allocation5], 256
    %v686 = vld [vmem:[%s685] sm:$0xff]
    %v687 = vld [vmem:[%s685 + $0x8] sm:$0xff]
    %v688 = vld [vmem:[%s685 + $0x10] sm:$0xff]
    %v689 = vld [vmem:[%s685 + $0x18] sm:$0xff]
    %v690 = vld [vmem:[%s685 + $0x20] sm:$0xff]
    %v691 = vld [vmem:[%s685 + $0x28] sm:$0xff]
    %v692 = vld [vmem:[%s685 + $0x30] sm:$0xff]
    %v693 = vld [vmem:[%s685 + $0x38] sm:$0xff]
    %v694 = vld [vmem:[%s685 + $0x40] sm:$0xff]
    %v695 = vld [vmem:[%s685 + $0x48] sm:$0xff]
    %v696 = vld [vmem:[%s685 + $0x50] sm:$0xff]
    %v697 = vld [vmem:[%s685 + $0x58] sm:$0xff]
    %v698 = vld [vmem:[%s685 + $0x60] sm:$0xff]
    %v699 = vld [vmem:[%s685 + $0x68] sm:$0xff]
    %v700 = vld [vmem:[%s685 + $0x70] sm:$0xff]
    %v701 = vld [vmem:[%s685 + $0x78] sm:$0xff]
    %702 = vmatprep.subr.mxu0 0.0
    %703 = vmatpush1.msra.mxu0 %v686
    %704 = vmatprep.subr.mxu0 0.0
    %705 = vmatpush1.msra.mxu0 %v687
    %706 = vmatprep.subr.mxu0 0.0
    %707 = vmatpush1.msra.mxu0 %v688
    %708 = vmatprep.subr.mxu0 0.0
    %709 = vmatpush1.msra.mxu0 %v689
    %710 = vmatprep.subr.mxu0 0.0
    %711 = vmatpush1.msra.mxu0 %v690
    %712 = vmatprep.subr.mxu0 0.0
    %713 = vmatpush1.msra.mxu0 %v691
    %714 = vmatprep.subr.mxu0 0.0
    %715 = vmatpush1.msra.mxu0 %v692
    %716 = vmatprep.subr.mxu0 0.0
    %717 = vmatpush1.msra.mxu0 %v693
    %718 = vmatprep.subr.mxu0 0.0
    %719 = vmatpush1.msra.mxu0 %v694
    %720 = vmatprep.subr.mxu0 0.0
    %721 = vmatpush1.msra.mxu0 %v695
    %722 = vmatprep.subr.mxu0 0.0
    %723 = vmatpush1.msra.mxu0 %v696
    %724 = vmatprep.subr.mxu0 0.0
    %725 = vmatpush1.msra.mxu0 %v697
    %726 = vmatprep.subr.mxu0 0.0
    %727 = vmatpush1.msra.mxu0 %v698
    %728 = vmatprep.subr.mxu0 0.0
    %729 = vmatpush1.msra.mxu0 %v699
    %730 = vmatprep.subr.mxu0 0.0
    %731 = vmatpush1.msra.mxu0 %v700
    %732 = vmatprep.subr.mxu0 0.0
    %733 = vmatpush1.msra.mxu0 %v701
    %734 = vmatprep.subr.mxu0 0.0
    %735 = vmatpush1.msra.mxu0 0.0
    %736 = vmatprep.subr.mxu0 0.0
    %737 = vmatpush1.msra.mxu0 0.0
    %738 = vmatprep.subr.mxu0 0.0
    %739 = vmatpush1.msra.mxu0 0.0
    %740 = vmatprep.subr.mxu0 0.0
    %741 = vmatpush1.msra.mxu0 0.0
    %742 = vmatprep.subr.mxu0 0.0
    %743 = vmatpush1.msra.mxu0 0.0
    %744 = vmatprep.subr.mxu0 0.0
    %745 = vmatpush1.msra.mxu0 0.0
    %746 = vmatprep.subr.mxu0 0.0
    %747 = vmatpush1.msra.mxu0 0.0
    %748 = vmatprep.subr.mxu0 0.0
    %749 = vmatpush1.msra.mxu0 0.0
    %750 = vmatprep.subr.mxu0 0.0
    %751 = vmatpush1.msra.mxu0 0.0
    %752 = vmatprep.subr.mxu0 0.0
    %753 = vmatpush1.msra.mxu0 0.0
    %754 = vmatprep.subr.mxu0 0.0
    %755 = vmatpush1.msra.mxu0 0.0
    %756 = vmatprep.subr.mxu0 0.0
    %757 = vmatpush1.msra.mxu0 0.0
    %758 = vmatprep.subr.mxu0 0.0
    %759 = vmatpush1.msra.mxu0 0.0
    %760 = vmatprep.subr.mxu0 0.0
    %761 = vmatpush1.msra.mxu0 0.0
    %762 = vmatprep.subr.mxu0 0.0
    %763 = vmatpush1.msra.mxu0 0.0
    %764 = vmatprep.subr.mxu0 0.0
    %765 = vmatpush1.msra.mxu0 0.0
    %766 = vmatprep.mubr.f32.mxu0 0.0
    %767 = vmatmul.mubr.f32.gmra.mrb[0].mxu0 %v569
    %v768 = vpop.f32.mrb[0].mxu0
    %v769 = vadd.f32 0.0, %v768
    %v770 = vpop.f32.mrb[0].mxu0
    %771 = vmatprep.mubr.f32.mxu0 0.0
    %772 = vmatmul.mubr.f32.gmra.mrb[0].mxu0 %v571
    %v773 = vpop.f32.mrb[0].mxu0
    %v774 = vadd.f32 0.0, %v773
    %v775 = vpop.f32.mrb[0].mxu0
    %776 = vdwg.mxu0
    %777 = vmatprep.subr.mxu0 0.0
    %778 = vmatpush1.msra.mxu0 %v669
    %779 = vmatprep.subr.mxu0 0.0
    %780 = vmatpush1.msra.mxu0 %v670
    %781 = vmatprep.subr.mxu0 0.0
    %782 = vmatpush1.msra.mxu0 %v671
    %783 = vmatprep.subr.mxu0 0.0
    %784 = vmatpush1.msra.mxu0 %v672
    %785 = vmatprep.subr.mxu0 0.0
    %786 = vmatpush1.msra.mxu0 %v673
    %787 = vmatprep.subr.mxu0 0.0
    %788 = vmatpush1.msra.mxu0 %v674
    %789 = vmatprep.subr.mxu0 0.0
    %790 = vmatpush1.msra.mxu0 %v675
    %791 = vmatprep.subr.mxu0 0.0
    %792 = vmatpush1.msra.mxu0 %v676
    %793 = vmatprep.subr.mxu0 0.0
    %794 = vmatpush1.msra.mxu0 %v677
    %795 = vmatprep.subr.mxu0 0.0
    %796 = vmatpush1.msra.mxu0 %v678
    %797 = vmatprep.subr.mxu0 0.0
    %798 = vmatpush1.msra.mxu0 %v679
    %799 = vmatprep.subr.mxu0 0.0
    %800 = vmatpush1.msra.mxu0 %v680
    %801 = vmatprep.subr.mxu0 0.0
    %802 = vmatpush1.msra.mxu0 %v681
    %803 = vmatprep.subr.mxu0 0.0
    %804 = vmatpush1.msra.mxu0 %v682
    %805 = vmatprep.subr.mxu0 0.0
    %806 = vmatpush1.msra.mxu0 %v683
    %807 = vmatprep.subr.mxu0 0.0
    %808 = vmatpush1.msra.mxu0 %v684
    %809 = vmatprep.subr.mxu0 0.0
    %810 = vmatpush1.msra.mxu0 0.0
    %811 = vmatprep.subr.mxu0 0.0
    %812 = vmatpush1.msra.mxu0 0.0
    %813 = vmatprep.subr.mxu0 0.0
    %814 = vmatpush1.msra.mxu0 0.0
    %815 = vmatprep.subr.mxu0 0.0
    %816 = vmatpush1.msra.mxu0 0.0
    %817 = vmatprep.subr.mxu0 0.0
    %818 = vmatpush1.msra.mxu0 0.0
    %819 = vmatprep.subr.mxu0 0.0
    %820 = vmatpush1.msra.mxu0 0.0
    %821 = vmatprep.subr.mxu0 0.0
    %822 = vmatpush1.msra.mxu0 0.0
    %823 = vmatprep.subr.mxu0 0.0
    %824 = vmatpush1.msra.mxu0 0.0
    %825 = vmatprep.subr.mxu0 0.0
    %826 = vmatpush1.msra.mxu0 0.0
    %827 = vmatprep.subr.mxu0 0.0
    %828 = vmatpush1.msra.mxu0 0.0
    %829 = vmatprep.subr.mxu0 0.0
    %830 = vmatpush1.msra.mxu0 0.0
    %831 = vmatprep.subr.mxu0 0.0
    %832 = vmatpush1.msra.mxu0 0.0
    %833 = vmatprep.subr.mxu0 0.0
    %834 = vmatpush1.msra.mxu0 0.0
    %835 = vmatprep.subr.mxu0 0.0
    %836 = vmatpush1.msra.mxu0 0.0
    %837 = vmatprep.subr.mxu0 0.0
    %838 = vmatpush1.msra.mxu0 0.0
    %839 = vmatprep.subr.mxu0 0.0
    %840 = vmatpush1.msra.mxu0 0.0
    %841 = vmatprep.mubr.f32.mxu0 0.0
    %842 = vmatmul.mubr.f32.gmra.mrb[0].mxu0 %v660
    %v843 = vpop.f32.mrb[0].mxu0
    %v844 = vadd.f32 %v769, %v843
    %v845 = vpop.f32.mrb[0].mxu0
    %846 = vmatprep.mubr.f32.mxu0 0.0
    %847 = vmatmul.mubr.f32.gmra.mrb[0].mxu0 %v665
    %v848 = vpop.f32.mrb[0].mxu0
    %v849 = vadd.f32 %v774, %v848
    %v850 = vpop.f32.mrb[0].mxu0
    %851 = vdwg.mxu0
    %v852 = vlaneseq
    %v853 = vshrl.u32 %v852, 7
    %v854 = vsub.s32 1, %v853
    %v855 = vrot.slane %v55, %v854
    %v856 = vadd.f32 %v844, %v855
    %v857 = vadd.f32 %v849, %v855
    %v858 = vmax.f32 %v856, 0.0
    %v859 = vmax.f32 %v857, 0.0
    %v860 = vmul.f32 %v858, %v858
    %v861 = vmul.f32 %v859, %v859
    %862 = vadd.xlane.f32.xlu0 %v860
    %v863 = vpop.xlane.xlu0 %862
    %864 = vadd.xlane.f32.xlu0 %v861
    %v865 = vpop.xlane.xlu0 %864
    %v866 = vrsqrt.pop %v863
    %v867 = vmul.f32 %v863, %v866
    %vm868 = vcmp.eq.f32.partialorder %v863, inf
    %v869 = vsel %vm868, %v863, %v867
    %vm870 = vcmp.eq.f32.partialorder %v863, 0.0
    %v871 = vand.u32 %v863, 2147483648
    %v872 = vsel %vm870, %v871, %v869
    %v873 = vrsqrt.pop %v865
    %v874 = vmul.f32 %v865, %v873
    %vm875 = vcmp.eq.f32.partialorder %v865, inf
    %v876 = vsel %vm875, %v865, %v874
    %vm877 = vcmp.eq.f32.partialorder %v865, 0.0
    %v878 = vand.u32 %v865, 2147483648
    %v879 = vsel %vm877, %v878, %v876
    %v880 = vmax.f32 %v872, 1e-12
    %v881 = vmax.f32 %v879, 1e-12
    %v882 = vrcp.pop %v880
    %v883 = vmul.f32 %v858, %v882
    %v884 = vrcp.pop %v881
    %v885 = vmul.f32 %v859, %v884
    %v886 = vld [vmem:[%s2] sm:$0xff]
    %v887 = vld [vmem:[%s2 + $0x8] sm:$0xff]
    %888 = vset.pattern.permute.xlu0 0
    %889 = vperm.xlu0 %888, %v886
    %v890 = vpop.permute.xlu0 %889
    %891 = vset.pattern.permute.xlu0 0
    %892 = vperm.xlu0 %891, %v887
    %v893 = vpop.permute.xlu0 %892
    %vm894 = vcmp.eq.s32.totalorder %v890, %v195
    %vm895 = vcmp.eq.s32.totalorder %v893, %v195
    %v896 = vsel %vm894, 1, 0
    %v897 = vsel %vm895, 1, 0
    %v898 = vcvt.s32.f32 %v896
    %v899 = vcvt.s32.f32 %v897
    %v901 = vsel %vm476, %v898, 0
    %v904 = vsel %vm476, %v899, 0
    %906 = vmatprep.subr.mxu0 0.0
    %907 = vmatpush1.msra.mxu0 %v56
    %908 = vmatprep.subr.mxu0 0.0
    %909 = vmatpush1.msra.mxu0 %v57
    %910 = vmatprep.subr.mxu0 0.0
    %911 = vmatpush1.msra.mxu0 %v58
    %912 = vmatprep.subr.mxu0 0.0
    %913 = vmatpush1.msra.mxu0 %v59
    %914 = vmatprep.subr.mxu0 0.0
    %915 = vmatpush1.msra.mxu0 %v60
    %916 = vmatprep.subr.mxu0 0.0
    %917 = vmatpush1.msra.mxu0 %v61
    %918 = vmatprep.subr.mxu0 0.0
    %919 = vmatpush1.msra.mxu0 %v62
    %920 = vmatprep.subr.mxu0 0.0
    %921 = vmatpush1.msra.mxu0 0.0
    %922 = vmatprep.subr.mxu0 0.0
    %923 = vmatpush1.msra.mxu0 0.0
    %924 = vmatprep.subr.mxu0 0.0
    %925 = vmatpush1.msra.mxu0 0.0
    %926 = vmatprep.subr.mxu0 0.0
    %927 = vmatpush1.msra.mxu0 0.0
    %928 = vmatprep.subr.mxu0 0.0
    %929 = vmatpush1.msra.mxu0 0.0
    %930 = vmatprep.subr.mxu0 0.0
    %931 = vmatpush1.msra.mxu0 0.0
    %932 = vmatprep.subr.mxu0 0.0
    %933 = vmatpush1.msra.mxu0 0.0
    %934 = vmatprep.subr.mxu0 0.0
    %935 = vmatpush1.msra.mxu0 0.0
    %936 = vmatprep.subr.mxu0 0.0
    %937 = vmatpush1.msra.mxu0 0.0
    %938 = vmatprep.subr.mxu0 0.0
    %939 = vmatpush1.msra.mxu0 0.0
    %940 = vmatprep.subr.mxu0 0.0
    %941 = vmatpush1.msra.mxu0 0.0
    %942 = vmatprep.subr.mxu0 0.0
    %943 = vmatpush1.msra.mxu0 0.0
    %944 = vmatprep.subr.mxu0 0.0
    %945 = vmatpush1.msra.mxu0 0.0
    %946 = vmatprep.subr.mxu0 0.0
    %947 = vmatpush1.msra.mxu0 0.0
    %948 = vmatprep.subr.mxu0 0.0
    %949 = vmatpush1.msra.mxu0 0.0
    %950 = vmatprep.subr.mxu0 0.0
    %951 = vmatpush1.msra.mxu0 0.0
    %952 = vmatprep.subr.mxu0 0.0
    %953 = vmatpush1.msra.mxu0 0.0
    %954 = vmatprep.subr.mxu0 0.0
    %955 = vmatpush1.msra.mxu0 0.0
    %956 = vmatprep.subr.mxu0 0.0
    %957 = vmatpush1.msra.mxu0 0.0
    %958 = vmatprep.subr.mxu0 0.0
    %959 = vmatpush1.msra.mxu0 0.0
    %960 = vmatprep.subr.mxu0 0.0
    %961 = vmatpush1.msra.mxu0 0.0
    %962 = vmatprep.subr.mxu0 0.0
    %963 = vmatpush1.msra.mxu0 0.0
    %964 = vmatprep.subr.mxu0 0.0
    %965 = vmatpush1.msra.mxu0 0.0
    %966 = vmatprep.subr.mxu0 0.0
    %967 = vmatpush1.msra.mxu0 0.0
    %968 = vmatprep.subr.mxu0 0.0
    %969 = vmatpush1.msra.mxu0 0.0
    %970 = vmatprep.mubr.f32.mxu0 0.0
    %971 = vmatmul.mubr.f32.gmra.mrb[0].mxu0 %v901
    %v972 = vpop.f32.mrb[0].mxu0
    %v973 = vadd.f32 0.0, %v972
    %v974 = vpop.f32.mrb[0].mxu0
    %975 = vmatprep.mubr.f32.mxu0 0.0
    %976 = vmatmul.mubr.f32.gmra.mrb[0].mxu0 %v904
    %v977 = vpop.f32.mrb[0].mxu0
    %v978 = vadd.f32 0.0, %v977
    %v979 = vpop.f32.mrb[0].mxu0
    %980 = vdwg.mxu0
    %s981 = scalar_lea.vmem [#allocation5], 384
    %v982 = vld [vmem:[%s981] sm:$0xff]
    %v983 = vld [vmem:[%s981 + $0x8] sm:$0xff]
    %v984 = vld [vmem:[%s981 + $0x10] sm:$0xff]
    %v985 = vld [vmem:[%s981 + $0x18] sm:$0xff]
    %v986 = vld [vmem:[%s981 + $0x20] sm:$0xff]
    %v987 = vld [vmem:[%s981 + $0x28] sm:$0xff]
    %v988 = vld [vmem:[%s981 + $0x30] sm:$0xff]
    %v989 = vld [vmem:[%s981 + $0x38] sm:$0xff]
    %v990 = vld [vmem:[%s981 + $0x40] sm:$0xff]
    %v991 = vld [vmem:[%s981 + $0x48] sm:$0xff]
    %v992 = vld [vmem:[%s981 + $0x50] sm:$0xff]
    %v993 = vld [vmem:[%s981 + $0x58] sm:$0xff]
    %v994 = vld [vmem:[%s981 + $0x60] sm:$0xff]
    %v995 = vld [vmem:[%s981 + $0x68] sm:$0xff]
    %v996 = vld [vmem:[%s981 + $0x70] sm:$0xff]
    %v997 = vld [vmem:[%s981 + $0x78] sm:$0xff]
    %s998 = scalar_lea.vmem [#allocation5], 512
    %v999 = vld [vmem:[%s998] sm:$0xff]
    %v1000 = vld [vmem:[%s998 + $0x8] sm:$0xff]
    %v1001 = vld [vmem:[%s998 + $0x10] sm:$0xff]
    %v1002 = vld [vmem:[%s998 + $0x18] sm:$0xff]
    %v1003 = vld [vmem:[%s998 + $0x20] sm:$0xff]
    %v1004 = vld [vmem:[%s998 + $0x28] sm:$0xff]
    %v1005 = vld [vmem:[%s998 + $0x30] sm:$0xff]
    %v1006 = vld [vmem:[%s998 + $0x38] sm:$0xff]
    %v1007 = vld [vmem:[%s998 + $0x40] sm:$0xff]
    %v1008 = vld [vmem:[%s998 + $0x48] sm:$0xff]
    %v1009 = vld [vmem:[%s998 + $0x50] sm:$0xff]
    %v1010 = vld [vmem:[%s998 + $0x58] sm:$0xff]
    %v1011 = vld [vmem:[%s998 + $0x60] sm:$0xff]
    %v1012 = vld [vmem:[%s998 + $0x68] sm:$0xff]
    %v1013 = vld [vmem:[%s998 + $0x70] sm:$0xff]
    %v1014 = vld [vmem:[%s998 + $0x78] sm:$0xff]
    %1015 = vmatprep.subr.mxu0 0.0
    %1016 = vmatpush1.msra.mxu0 %v999
    %1017 = vmatprep.subr.mxu0 0.0
    %1018 = vmatpush1.msra.mxu0 %v1000
    %1019 = vmatprep.subr.mxu0 0.0
    %1020 = vmatpush1.msra.mxu0 %v1001
    %1021 = vmatprep.subr.mxu0 0.0
    %1022 = vmatpush1.msra.mxu0 %v1002
    %1023 = vmatprep.subr.mxu0 0.0
    %1024 = vmatpush1.msra.mxu0 %v1003
    %1025 = vmatprep.subr.mxu0 0.0
    %1026 = vmatpush1.msra.mxu0 %v1004
    %1027 = vmatprep.subr.mxu0 0.0
    %1028 = vmatpush1.msra.mxu0 %v1005
    %1029 = vmatprep.subr.mxu0 0.0
    %1030 = vmatpush1.msra.mxu0 %v1006
    %1031 = vmatprep.subr.mxu0 0.0
    %1032 = vmatpush1.msra.mxu0 %v1007
    %1033 = vmatprep.subr.mxu0 0.0
    %1034 = vmatpush1.msra.mxu0 %v1008
    %1035 = vmatprep.subr.mxu0 0.0
    %1036 = vmatpush1.msra.mxu0 %v1009
    %1037 = vmatprep.subr.mxu0 0.0
    %1038 = vmatpush1.msra.mxu0 %v1010
    %1039 = vmatprep.subr.mxu0 0.0
    %1040 = vmatpush1.msra.mxu0 %v1011
    %1041 = vmatprep.subr.mxu0 0.0
    %1042 = vmatpush1.msra.mxu0 %v1012
    %1043 = vmatprep.subr.mxu0 0.0
    %1044 = vmatpush1.msra.mxu0 %v1013
    %1045 = vmatprep.subr.mxu0 0.0
    %1046 = vmatpush1.msra.mxu0 %v1014
    %1047 = vmatprep.subr.mxu0 0.0
    %1048 = vmatpush1.msra.mxu0 0.0
    %1049 = vmatprep.subr.mxu0 0.0
    %1050 = vmatpush1.msra.mxu0 0.0
    %1051 = vmatprep.subr.mxu0 0.0
    %1052 = vmatpush1.msra.mxu0 0.0
    %1053 = vmatprep.subr.mxu0 0.0
    %1054 = vmatpush1.msra.mxu0 0.0
    %1055 = vmatprep.subr.mxu0 0.0
    %1056 = vmatpush1.msra.mxu0 0.0
    %1057 = vmatprep.subr.mxu0 0.0
    %1058 = vmatpush1.msra.mxu0 0.0
    %1059 = vmatprep.subr.mxu0 0.0
    %1060 = vmatpush1.msra.mxu0 0.0
    %1061 = vmatprep.subr.mxu0 0.0
    %1062 = vmatpush1.msra.mxu0 0.0
    %1063 = vmatprep.subr.mxu0 0.0
    %1064 = vmatpush1.msra.mxu0 0.0
    %1065 = vmatprep.subr.mxu0 0.0
    %1066 = vmatpush1.msra.mxu0 0.0
    %1067 = vmatprep.subr.mxu0 0.0
    %1068 = vmatpush1.msra.mxu0 0.0
    %1069 = vmatprep.subr.mxu0 0.0
    %1070 = vmatpush1.msra.mxu0 0.0
    %1071 = vmatprep.subr.mxu0 0.0
    %1072 = vmatpush1.msra.mxu0 0.0
    %1073 = vmatprep.subr.mxu0 0.0
    %1074 = vmatpush1.msra.mxu0 0.0
    %1075 = vmatprep.subr.mxu0 0.0
    %1076 = vmatpush1.msra.mxu0 0.0
    %1077 = vmatprep.subr.mxu0 0.0
    %1078 = vmatpush1.msra.mxu0 0.0
    %1079 = vmatprep.mubr.f32.mxu0 0.0
    %1080 = vmatmul.mubr.f32.gmra.mrb[0].mxu0 %v883
    %v1081 = vpop.f32.mrb[0].mxu0
    %v1082 = vadd.f32 0.0, %v1081
    %v1083 = vpop.f32.mrb[0].mxu0
    %1084 = vmatprep.mubr.f32.mxu0 0.0
    %1085 = vmatmul.mubr.f32.gmra.mrb[0].mxu0 %v885
    %v1086 = vpop.f32.mrb[0].mxu0
    %v1087 = vadd.f32 0.0, %v1086
    %v1088 = vpop.f32.mrb[0].mxu0
    %1089 = vdwg.mxu0
    %1090 = vmatprep.subr.mxu0 0.0
    %1091 = vmatpush1.msra.mxu0 %v982
    %1092 = vmatprep.subr.mxu0 0.0
    %1093 = vmatpush1.msra.mxu0 %v983
    %1094 = vmatprep.subr.mxu0 0.0
    %1095 = vmatpush1.msra.mxu0 %v984
    %1096 = vmatprep.subr.mxu0 0.0
    %1097 = vmatpush1.msra.mxu0 %v985
    %1098 = vmatprep.subr.mxu0 0.0
    %1099 = vmatpush1.msra.mxu0 %v986
    %1100 = vmatprep.subr.mxu0 0.0
    %1101 = vmatpush1.msra.mxu0 %v987
    %1102 = vmatprep.subr.mxu0 0.0
    %1103 = vmatpush1.msra.mxu0 %v988
    %1104 = vmatprep.subr.mxu0 0.0
    %1105 = vmatpush1.msra.mxu0 %v989
    %1106 = vmatprep.subr.mxu0 0.0
    %1107 = vmatpush1.msra.mxu0 %v990
    %1108 = vmatprep.subr.mxu0 0.0
    %1109 = vmatpush1.msra.mxu0 %v991
    %1110 = vmatprep.subr.mxu0 0.0
    %1111 = vmatpush1.msra.mxu0 %v992
    %1112 = vmatprep.subr.mxu0 0.0
    %1113 = vmatpush1.msra.mxu0 %v993
    %1114 = vmatprep.subr.mxu0 0.0
    %1115 = vmatpush1.msra.mxu0 %v994
    %1116 = vmatprep.subr.mxu0 0.0
    %1117 = vmatpush1.msra.mxu0 %v995
    %1118 = vmatprep.subr.mxu0 0.0
    %1119 = vmatpush1.msra.mxu0 %v996
    %1120 = vmatprep.subr.mxu0 0.0
    %1121 = vmatpush1.msra.mxu0 %v997
    %1122 = vmatprep.subr.mxu0 0.0
    %1123 = vmatpush1.msra.mxu0 0.0
    %1124 = vmatprep.subr.mxu0 0.0
    %1125 = vmatpush1.msra.mxu0 0.0
    %1126 = vmatprep.subr.mxu0 0.0
    %1127 = vmatpush1.msra.mxu0 0.0
    %1128 = vmatprep.subr.mxu0 0.0
    %1129 = vmatpush1.msra.mxu0 0.0
    %1130 = vmatprep.subr.mxu0 0.0
    %1131 = vmatpush1.msra.mxu0 0.0
    %1132 = vmatprep.subr.mxu0 0.0
    %1133 = vmatpush1.msra.mxu0 0.0
    %1134 = vmatprep.subr.mxu0 0.0
    %1135 = vmatpush1.msra.mxu0 0.0
    %1136 = vmatprep.subr.mxu0 0.0
    %1137 = vmatpush1.msra.mxu0 0.0
    %1138 = vmatprep.subr.mxu0 0.0
    %1139 = vmatpush1.msra.mxu0 0.0
    %1140 = vmatprep.subr.mxu0 0.0
    %1141 = vmatpush1.msra.mxu0 0.0
    %1142 = vmatprep.subr.mxu0 0.0
    %1143 = vmatpush1.msra.mxu0 0.0
    %1144 = vmatprep.subr.mxu0 0.0
    %1145 = vmatpush1.msra.mxu0 0.0
    %1146 = vmatprep.subr.mxu0 0.0
    %1147 = vmatpush1.msra.mxu0 0.0
    %1148 = vmatprep.subr.mxu0 0.0
    %1149 = vmatpush1.msra.mxu0 0.0
    %1150 = vmatprep.subr.mxu0 0.0
    %1151 = vmatpush1.msra.mxu0 0.0
    %1152 = vmatprep.subr.mxu0 0.0
    %1153 = vmatpush1.msra.mxu0 0.0
    %1154 = vmatprep.mubr.f32.mxu0 0.0
    %1155 = vmatmul.mubr.f32.gmra.mrb[0].mxu0 %v973
    %v1156 = vpop.f32.mrb[0].mxu0
    %v1157 = vadd.f32 %v1082, %v1156
    %v1158 = vpop.f32.mrb[0].mxu0
    %1159 = vmatprep.mubr.f32.mxu0 0.0
    %1160 = vmatmul.mubr.f32.gmra.mrb[0].mxu0 %v978
    %v1161 = vpop.f32.mrb[0].mxu0
    %v1162 = vadd.f32 %v1087, %v1161
    %v1163 = vpop.f32.mrb[0].mxu0
    %1164 = vdwg.mxu0
    %v1165 = vlaneseq
    %v1166 = vshrl.u32 %v1165, 7
    %v1167 = vsub.s32 2, %v1166
    %v1168 = vrot.slane %v55, %v1167
    %v1169 = vadd.f32 %v1157, %v1168
    %v1170 = vadd.f32 %v1162, %v1168
    %v1171 = vmax.f32 %v1169, 0.0
    %v1172 = vmax.f32 %v1170, 0.0
    %v1173 = vmul.f32 %v1171, %v1171
    %v1174 = vmul.f32 %v1172, %v1172
    %1175 = vadd.xlane.f32.xlu0 %v1173
    %v1176 = vpop.xlane.xlu0 %1175
    %1177 = vadd.xlane.f32.xlu0 %v1174
    %v1178 = vpop.xlane.xlu0 %1177
    %v1179 = vrsqrt.pop %v1176
    %v1180 = vmul.f32 %v1176, %v1179
    %vm1181 = vcmp.eq.f32.partialorder %v1176, inf
    %v1182 = vsel %vm1181, %v1176, %v1180
    %vm1183 = vcmp.eq.f32.partialorder %v1176, 0.0
    %v1184 = vand.u32 %v1176, 2147483648
    %v1185 = vsel %vm1183, %v1184, %v1182
    %v1186 = vrsqrt.pop %v1178
    %v1187 = vmul.f32 %v1178, %v1186
    %vm1188 = vcmp.eq.f32.partialorder %v1178, inf
    %v1189 = vsel %vm1188, %v1178, %v1187
    %vm1190 = vcmp.eq.f32.partialorder %v1178, 0.0
    %v1191 = vand.u32 %v1178, 2147483648
    %v1192 = vsel %vm1190, %v1191, %v1189
    %v1193 = vmax.f32 %v1185, 1e-12
    %v1194 = vmax.f32 %v1192, 1e-12
    %v1195 = vrcp.pop %v1193
    %v1196 = vmul.f32 %v1171, %v1195
    %v1197 = vrcp.pop %v1194
    %v1198 = vmul.f32 %v1172, %v1197
    %s1199 = scalar_lea.vmem [#allocation5], 640
    %v1200 = vld [vmem:[%s1199] sm:$0xff]
    %v1201 = vld [vmem:[%s1199 + $0x8] sm:$0xff]
    %v1202 = vld [vmem:[%s1199 + $0x10] sm:$0xff]
    %v1203 = vld [vmem:[%s1199 + $0x18] sm:$0xff]
    %v1204 = vld [vmem:[%s1199 + $0x20] sm:$0xff]
    %v1205 = vld [vmem:[%s1199 + $0x28] sm:$0xff]
    %v1206 = vld [vmem:[%s1199 + $0x30] sm:$0xff]
    %v1207 = vld [vmem:[%s1199 + $0x38] sm:$0xff]
    %v1208 = vld [vmem:[%s1199 + $0x40] sm:$0xff]
    %v1209 = vld [vmem:[%s1199 + $0x48] sm:$0xff]
    %v1210 = vld [vmem:[%s1199 + $0x50] sm:$0xff]
    %v1211 = vld [vmem:[%s1199 + $0x58] sm:$0xff]
    %v1212 = vld [vmem:[%s1199 + $0x60] sm:$0xff]
    %v1213 = vld [vmem:[%s1199 + $0x68] sm:$0xff]
    %v1214 = vld [vmem:[%s1199 + $0x70] sm:$0xff]
    %v1215 = vld [vmem:[%s1199 + $0x78] sm:$0xff]
    %v1216 = vlaneseq
    %v1217 = vshrl.u32 %v1216, 7
    %v1218 = vsub.s32 3, %v1217
    %v1219 = vrot.slane %v55, %v1218
    %1220 = vmatprep.subr.mxu0 0.0
    %1221 = vmatpush1.msra.mxu0 %v1200
    %1222 = vmatprep.subr.mxu0 0.0
    %1223 = vmatpush1.msra.mxu0 %v1201
    %1224 = vmatprep.subr.mxu0 0.0
    %1225 = vmatpush1.msra.mxu0 %v1202
    %1226 = vmatprep.subr.mxu0 0.0
    %1227 = vmatpush1.msra.mxu0 %v1203
    %1228 = vmatprep.subr.mxu0 0.0
    %1229 = vmatpush1.msra.mxu0 %v1204
    %1230 = vmatprep.subr.mxu0 0.0
    %1231 = vmatpush1.msra.mxu0 %v1205
    %1232 = vmatprep.subr.mxu0 0.0
    %1233 = vmatpush1.msra.mxu0 %v1206
    %1234 = vmatprep.subr.mxu0 0.0
    %1235 = vmatpush1.msra.mxu0 %v1207
    %1236 = vmatprep.subr.mxu0 0.0
    %1237 = vmatpush1.msra.mxu0 %v1208
    %1238 = vmatprep.subr.mxu0 0.0
    %1239 = vmatpush1.msra.mxu0 %v1209
    %1240 = vmatprep.subr.mxu0 0.0
    %1241 = vmatpush1.msra.mxu0 %v1210
    %1242 = vmatprep.subr.mxu0 0.0
    %1243 = vmatpush1.msra.mxu0 %v1211
    %1244 = vmatprep.subr.mxu0 0.0
    %1245 = vmatpush1.msra.mxu0 %v1212
    %1246 = vmatprep.subr.mxu0 0.0
    %1247 = vmatpush1.msra.mxu0 %v1213
    %1248 = vmatprep.subr.mxu0 0.0
    %1249 = vmatpush1.msra.mxu0 %v1214
    %1250 = vmatprep.subr.mxu0 0.0
    %1251 = vmatpush1.msra.mxu0 %v1215
    %1252 = vmatprep.subr.mxu0 0.0
    %1253 = vmatpush1.msra.mxu0 0.0
    %1254 = vmatprep.subr.mxu0 0.0
    %1255 = vmatpush1.msra.mxu0 0.0
    %1256 = vmatprep.subr.mxu0 0.0
    %1257 = vmatpush1.msra.mxu0 0.0
    %1258 = vmatprep.subr.mxu0 0.0
    %1259 = vmatpush1.msra.mxu0 0.0
    %1260 = vmatprep.subr.mxu0 0.0
    %1261 = vmatpush1.msra.mxu0 0.0
    %1262 = vmatprep.subr.mxu0 0.0
    %1263 = vmatpush1.msra.mxu0 0.0
    %1264 = vmatprep.subr.mxu0 0.0
    %1265 = vmatpush1.msra.mxu0 0.0
    %1266 = vmatprep.subr.mxu0 0.0
    %1267 = vmatpush1.msra.mxu0 0.0
    %1268 = vmatprep.subr.mxu0 0.0
    %1269 = vmatpush1.msra.mxu0 0.0
    %1270 = vmatprep.subr.mxu0 0.0
    %1271 = vmatpush1.msra.mxu0 0.0
    %1272 = vmatprep.subr.mxu0 0.0
    %1273 = vmatpush1.msra.mxu0 0.0
    %1274 = vmatprep.subr.mxu0 0.0
    %1275 = vmatpush1.msra.mxu0 0.0
    %1276 = vmatprep.subr.mxu0 0.0
    %1277 = vmatpush1.msra.mxu0 0.0
    %1278 = vmatprep.subr.mxu0 0.0
    %1279 = vmatpush1.msra.mxu0 0.0
    %1280 = vmatprep.subr.mxu0 0.0
    %1281 = vmatpush1.msra.mxu0 0.0
    %1282 = vmatprep.subr.mxu0 0.0
    %1283 = vmatpush1.msra.mxu0 0.0
    %1284 = vmatprep.mubr.f32.mxu0 0.0
    %1285 = vmatmul.mubr.f32.gmra.mrb[0].mxu0 %v1196
    %v1286 = vpop.f32.mrb[0].mxu0
    %v1287 = vadd.f32 %v1219, %v1286
    %v1288 = vpop.f32.mrb[0].mxu0
    %1289 = vmatprep.mubr.f32.mxu0 0.0
    %1290 = vmatmul.mubr.f32.gmra.mrb[0].mxu0 %v1198
    %v1291 = vpop.f32.mrb[0].mxu0
    %v1292 = vadd.f32 %v1219, %v1291
    %v1293 = vpop.f32.mrb[0].mxu0
    %1294 = vdwg.mxu0
    %1295 = vst [vmem:[#allocation7] sm:$0xff] %v1287
    %1296 = vst [vmem:[#allocation7 + $0x8] sm:$0xff] %v1292
    // Predicated region
    $region38: #{tpu_custom_call.1} parent=1 // pred_check
      _
    $region39: #{tpu_custom_call.1} parent=1 // pred_check_branch
      %1298 = sbr.rel (0) target = $region41
    $region40: #{tpu_custom_call.1} parent=1 // pred_region
      %s1300 = ssub.s32 256, 256
      %1301 = vsyncadd [#allocation4], %s1300
      %s1302 = sshll.u32 [#allocation7], 4
      %s1303 = int_to_ptr.vmem [resolvable:$true] %s1302
      %1308 = dma.vmem_to_hbm [thread:$0]  %s1303, 256, %s7, [#allocation4], 128, 128, 8
    $region41: #{tpu_custom_call.1} parent=1 // pred_fallthru
      _
    // Predicated region
    $region42: #{tpu_custom_call.1} parent=1 // pred_check
      _
    $region43: #{tpu_custom_call.1} parent=1 // pred_check_branch
      %1310 = sbr.rel (0) target = $region45
    $region44: #{tpu_custom_call.1} parent=1 // pred_region
      %1311 = dma.done [#allocation4], 256
    $region45: #{tpu_custom_call.1} parent=1 // pred_fallthru
      _
    %1312 = vsyncpa [#allocation3], 1
    %1313 = vsyncpa [#allocation6], 1
    %1314 = vsyncpa [#allocation4], 1

</llo_original>
